<compile_context>
chip_gen: v6e
topology: v6e:2x2x1
jax: 0.10.0
libtpu: 0.0.40
codegen_flags: <defaults>
</compile_context>

<pallas_src>
import functools
import math

import numpy as np
import jax
import jax.numpy as jnp
from jax import lax
from jax.experimental import pallas as pl
from jax.experimental.pallas import tpu as pltpu

# TODO(synk): K_MAX is a silent static cap on #instances per sample; samples
# with more than K_MAX distinct instance ids get the extras merged into the
# last cluster (the original module has no such cap).
K_MAX = 8
# Samples per grid step: modest (4) so one step's unrolled intermediates stay
# within the 64-vreg budget while the ~0.35us/step overhead is still amortized;
# bb*D = 16 sublanes -> dense f32 tiles when D divides 8.
B_BLOCK_MAX = 4
DELTA_V = 0.5
DELTA_D = 1.5
PARAM_VAR = 1.0
PARAM_DIST = 1.0
PARAM_REG = 0.001

_BIG_F = 3.0e38  # "not a cluster" sentinel (finite, < f32 max)


def _disc_loss_kernel(pred_ref, sem_ref, inst_ref, out_ref, *, loss_weight,
                      ignore_index, batch_block, feature_dim):
    # pred_ref : (1, bb*D, N) f32 -- bb samples' embeddings, dense sublane pack
    # sem_ref  : (1, bb, N)   i32 -- semantic labels
    # inst_ref : (1, bb, N)   i32 -- instance labels
    # out_ref  : (1, 8, 128)  f32 -- lanes 0..3 = block sums (loss,var,dist,reg)
    K = K_MAX
    D = feature_dim
    N = pred_ref.shape[2]

    pred_view = pred_ref.at[0]   # (bb*D, N) ref view, no load
    sem_view = sem_ref.at[0]     # (bb, N)
    inst_view = inst_ref.at[0]   # (bb, N)

    k_iota = lax.broadcasted_iota(jnp.int32, (K, N), 0)      # cluster / sublane
    d_iota = lax.broadcasted_iota(jnp.int32, (K, D + 1), 1)  # feature / lane

    sum_loss = jnp.zeros((1, 1), jnp.float32)
    sum_var = jnp.zeros((1, 1), jnp.float32)
    sum_dst = jnp.zeros((1, 1), jnp.float32)
    sum_reg = jnp.zeros((1, 1), jnp.float32)

    for b in range(batch_block):   # small static unroll, bounded by B_BLOCK_MAX
        sem = sem_view[b:b + 1, :]                                   # (1, N) i32
        inst = inst_view[b:b + 1, :]                                 # (1, N) i32
        valid = sem != ignore_index
        # Original intent of the module: points of class 1 share instance id 0.
        lab = jnp.where(sem == 1, 0, inst).astype(jnp.float32)
        lab = jnp.where(valid, lab, _BIG_F)                          # (1, N) f32

        # Dense instance ids in [0, K) via a bounded min-scan (replaces the
        # host-side argsort/scatter densification entirely).  f32 compares are
        # exact for integer labels < 2^24.
        ids = jnp.full((1, N), K, jnp.int32)                         # K == invalid
        rem = lab
        for k in range(K):
            cur = jnp.min(rem, axis=1, keepdims=True)                # (1, 1)
            hit = jnp.logical_and(lab == cur, cur < _BIG_F)
            ids = jnp.where(hit, k, ids)
            rem = jnp.where(rem == cur, _BIG_F, rem)
        # TODO(synk): labels beyond the K_MAX-th distinct one are merged into
        # the last cluster; the PyTorch reference has no such cap.
        ids = jnp.where(rem < _BIG_F, K - 1, ids)

        onehot = jnp.where(ids == k_iota, 1.0, 0.0)                  # (K, N)
        counts = jnp.sum(onehot, axis=1, keepdims=True)              # (K, 1)
        inv_cnt = pl.reciprocal(counts + 1e-8, approx=True)          # EUP slot

        # Segmented means + per-point L1 distances; each pred row is broadcast
        # to (K, N) once and reused (no re-broadcast for the distance term).
        base = b * D
        mu_cols = []
        dist_all = None
        for d in range(D):
            row = pred_view[base + d:base + d + 1, :]                # (1, N)
            row_b = jnp.broadcast_to(row, (K, N))                    # one bcast
            mu_d = jnp.sum(onehot * row_b, axis=1, keepdims=True) * inv_cnt
            mu_cols.append(mu_d)                                     # (K, 1)
            diff = jnp.abs(row_b - mu_d)                             # (K, N)
            dist_all = diff if dist_all is None else dist_all + diff
        dist_h = jnp.square(jnp.maximum(dist_all - DELTA_V, 0.0))    # (K, N)
        l_var_k = jnp.sum(dist_h * onehot, axis=1, keepdims=True) * inv_cnt

        presentf = jnp.where(counts > 0.5, 1.0, 0.0)                 # (K, 1)
        num = jnp.sum(presentf, keepdims=True)                       # (1, 1)
        inv_num = pl.reciprocal(jnp.maximum(num, 1.0), approx=True)

        s_var = jnp.sum(l_var_k, keepdims=True)                      # (1, 1)
        l_var = jnp.where(num > 0.5, s_var * inv_num, 0.0)

        # mu augmented with a presence lane -> ONE roll per shift.  The lane-D
        # |presence diff| only pollutes pairs the presence mask already kills.
        mu_aug = jnp.where(d_iota == D, presentf, 0.0)               # (K, D+1)
        for d in range(D):
            mu_aug = mu_aug + jnp.where(d_iota == d, mu_cols[d], 0.0)
        acc_pair = jnp.zeros((K, 1), jnp.float32)
        for s in range(1, K):
            rolled = pltpu.roll(mu_aug, shift=s, axis=0)             # (K, D+1)
            pd = jnp.sum(jnp.abs(mu_aug - rolled), axis=1, keepdims=True)
            pres_s = rolled[:, D:D + 1]                              # (K, 1)
            h = jnp.square(jnp.maximum(2.0 * DELTA_D - pd, 0.0))
            acc_pair = acc_pair + h * presentf * pres_s
        s_dist = jnp.sum(acc_pair, keepdims=True)                    # (1, 1)
        denom = jnp.maximum(num * (num - 1.0), 1.0)
        l_dist = jnp.where(num > 1.5,
                           s_dist * pl.reciprocal(denom, approx=True), 0.0)

        mu_abs = jnp.abs(mu_cols[0])
        for d in range(1, D):
            mu_abs = mu_abs + jnp.abs(mu_cols[d])                    # (K, 1)
        s_reg = jnp.sum(mu_abs * presentf, keepdims=True)            # (1, 1)
        l_reg = jnp.where(num > 0.5, s_reg * inv_num, 0.0)

        l_var = PARAM_VAR * l_var
        l_dist = PARAM_DIST * l_dist
        l_reg = PARAM_REG * l_reg
        loss = loss_weight * (l_var + l_dist + l_reg)

        sum_loss = sum_loss + loss
        sum_var = sum_var + l_var
        sum_dst = sum_dst + l_dist
        sum_reg = sum_reg + l_reg

    lane = lax.broadcasted_iota(jnp.int32, (1, 128), 1)
    row = (jnp.where(lane == 0, sum_loss, 0.0)
           + jnp.where(lane == 1, sum_var, 0.0)
           + jnp.where(lane == 2, sum_dst, 0.0)
           + jnp.where(lane == 3, sum_reg, 0.0))
    out_ref[0] = jnp.broadcast_to(row, (8, 128))   # full tile, unmasked store


def _pick_batch_block(batch, feature_dim):
    """>=2 grid blocks when B>=2 (v7x: 2 TCs), dense sublanes when possible."""
    if batch <= 1:
        return 1
    bb = max(1, min(B_BLOCK_MAX, batch // 2))
    sub_mult = 8 // math.gcd(feature_dim, 8)   # bb multiple for dense f32 tiles
    if bb >= sub_mult:
        bb = (bb // sub_mult) * sub_mult
    return bb


def discriminative_loss(embedding_logits, semantic_labels, instance_labels,
                        feature_dim, ignore_index=-100, loss_weight=1.0):
    B, D, N = embedding_logits.shape
    assert D == feature_dim
    pred = embedding_logits.astype(jnp.float32)      # native (B, D, N) layout
    sem = semantic_labels.astype(jnp.int32)
    inst = instance_labels.astype(jnp.int32)

    bb = _pick_batch_block(B, D)
    nblocks = -(-B // bb)
    b_pad = nblocks * bb
    if b_pad != B:
        padn = b_pad - B
        pred = jnp.pad(pred, ((0, padn), (0, 0), (0, 0)))
        # padded samples: every point ignored -> zero loss contribution
        sem = jnp.pad(sem, ((0, padn), (0, 0)), constant_values=ignore_index)
        inst = jnp.pad(inst, ((0, padn), (0, 0)))

    # Free leading-dim reshapes -> dense sublane packing inside each block.
    pred_r = pred.reshape(nblocks, bb * D, N)
    sem_r = sem.reshape(nblocks, bb, N)
    inst_r = inst.reshape(nblocks, bb, N)

    kernel = functools.partial(
        _disc_loss_kernel, loss_weight=float(loss_weight),
        ignore_index=int(ignore_index), batch_block=bb, feature_dim=D)

    out = pl.pallas_call(
        kernel,
        out_shape=jax.ShapeDtypeStruct((nblocks, 8, 128), jnp.float32),
        grid_spec=pltpu.PrefetchScalarGridSpec(
            num_scalar_prefetch=0,
            grid=(nblocks,),
            in_specs=[
                pl.BlockSpec((1, bb * D, N), lambda g: (g, 0, 0)),
                pl.BlockSpec((1, bb, N), lambda g: (g, 0, 0)),
                pl.BlockSpec((1, bb, N), lambda g: (g, 0, 0)),
            ],
            out_specs=pl.BlockSpec((1, 8, 128), lambda g: (g, 0, 0)),
        ),
        compiler_params=pltpu.CompilerParams(
            dimension_semantics=("parallel",)),   # blocks split across TCs (v7x)
    )(pred_r, sem_r, inst_r)

    sums = jnp.sum(out[:, 0, :4], axis=0) / float(B)  # loss, var, dist, reg
    return {
        "ins_loss": sums[0],
        "ins_var_contribution": sums[1],
        "ins_dist_contribution": sums[2],
        "ins_reg_contribution": sums[3],
    }


def _reference_np(embedding_logits, semantic_labels, instance_labels,
                  feature_dim, ignore_index=-100, loss_weight=1.0):
    emb = np.asarray(embedding_logits, dtype=np.float64)
    sem = np.asarray(semantic_labels)
    ins = np.asarray(instance_labels)
    B = emb.shape[0]
    losses, lvars, ldists, lregs = [], [], [], []
    for s in range(B):
        pred = emb[s].T                                  # (N, D)
        m = sem[s] != ignore_index
        pred = pred[m]
        inst = ins[s][m].copy()
        inst[sem[s][m] == 1] = 0
        uniq, inv, counts = np.unique(inst, return_inverse=True,
                                      return_counts=True)
        K = uniq.shape[0]
        seg = np.zeros((K, feature_dim))
        np.add.at(seg, inv, pred)
        mu = seg / (counts[:, None] + 1e-8)
        d = np.abs(pred - mu[inv]).sum(1)
        d = np.maximum(d - DELTA_V, 0.0) ** 2
        lv = np.zeros(K)
        np.add.at(lv, inv, d)
        lv = (lv / (counts + 1e-8)).sum() / float(K)
        pd = np.abs(mu[:, None, :] - mu[None, :, :]).sum(-1)
        mask = ~np.eye(K, dtype=bool)
        ld = (np.maximum(2.0 * DELTA_D - pd[mask], 0.0) ** 2).mean() if K > 1 else 0.0
        lr = np.abs(mu).sum(1).mean()
        lv, ld, lr = PARAM_VAR * lv, PARAM_DIST * ld, PARAM_REG * lr
        losses.append(loss_weight * (lv + ld + lr))
        lvars.append(lv)
        ldists.append(ld)
        lregs.append(lr)
    return {
        "ins_loss": float(np.mean(losses)),
        "ins_var_contribution": float(np.mean(lvars)),
        "ins_dist_contribution": float(np.mean(ldists)),
        "ins_reg_contribution": float(np.mean(lregs)),
    }


if __name__ == "__main__":
    B, D, N = 2, 4, 256
    key = jax.random.PRNGKey(0)
    k1, k2, k3 = jax.random.split(key, 3)

    embedding_logits = jax.random.normal(k1, (B, D, N), dtype=jnp.float32)
    # classes in {1, 2} (non-zero, non-ignored) so the original module's forward
    # would execute without the boolean-mask length mismatch.
    semantic_labels = jax.random.randint(k2, (B, N), 1, 3, dtype=jnp.int32)
    instance_labels = jax.random.randint(k3, (B, N), 0, 5, dtype=jnp.int32)

    out = discriminative_loss(embedding_logits, semantic_labels,
                              instance_labels, feature_dim=D,
                              ignore_index=-100, loss_weight=1.0)
    out = jax.block_until_ready(out)

    ref = _reference_np(embedding_logits, semantic_labels, instance_labels,
                        feature_dim=D, ignore_index=-100, loss_weight=1.0)
    for name in ref:
        got, want = float(out[name]), ref[name]
        assert np.allclose(got, want, rtol=2e-2, atol=1e-2), (name, got, want)

    print("KERNEL_OK")
</pallas_src>

<mosaic_0001>
module attributes {stable_mosaic.version = 11 : i64} {
  func.func @_disc_loss_kernel(%arg0: i32, %arg1: memref<1x4x256xf32, #tpu.memory_space<vmem>>, %arg2: memref<1x1x256xi32, #tpu.memory_space<vmem>>, %arg3: memref<1x1x256xi32, #tpu.memory_space<vmem>>, %arg4: memref<1x8x128xf32, #tpu.memory_space<vmem>>) attributes {dimension_semantics = [#tpu.dimension_semantics<parallel>], iteration_bounds = array<i64: 2>, scalar_prefetch = 0 : i64, scratch_operands = 0 : i64, tpu.core_type = #tpu.core_type<tc>, window_params = [{transform_indices = @transform_0, window_bounds = array<i64: 1, 4, 256>}, {transform_indices = @transform_1, window_bounds = array<i64: 1, 1, 256>}, {transform_indices = @transform_2, window_bounds = array<i64: 1, 1, 256>}, {transform_indices = @transform_3, window_bounds = array<i64: 1, 8, 128>}]} {
    %0 = tpu.iota {dimensions = array<i32: 0>} : vector<8x256xi32>
    %1 = tpu.iota {dimensions = array<i32: 1>} : vector<8x5xi32>
    %cst = arith.constant 0.000000e+00 : f32
    %2 = vector.broadcast %cst : f32 to vector<1x1xf32>
    %cst_0 = arith.constant 0.000000e+00 : f32
    %3 = vector.broadcast %cst_0 : f32 to vector<1x1xf32>
    %cst_1 = arith.constant 0.000000e+00 : f32
    %4 = vector.broadcast %cst_1 : f32 to vector<1x1xf32>
    %cst_2 = arith.constant 0.000000e+00 : f32
    %5 = vector.broadcast %cst_2 : f32 to vector<1x1xf32>
    %c0_i32 = arith.constant 0 : i32
    %c0_i32_3 = arith.constant 0 : i32
    %c0_i32_4 = arith.constant 0 : i32
    %6 = tpu.memref_slice %arg2[%c0_i32, %c0_i32_3, %c0_i32_4] : memref<1x1x256xi32, #tpu.memory_space<vmem>> -> memref<1x1x256xi32, #tpu.memory_space<vmem>>
    %7 = tpu.memref_squeeze %6 : memref<1x1x256xi32, #tpu.memory_space<vmem>> -> memref<1x256xi32, #tpu.memory_space<vmem>>
    %c0 = arith.constant 0 : index
    %c0_5 = arith.constant 0 : index
    %8 = vector.load %7[%c0, %c0_5] : memref<1x256xi32, #tpu.memory_space<vmem>>, vector<1x256xi32>
    %c0_i32_6 = arith.constant 0 : i32
    %c0_i32_7 = arith.constant 0 : i32
    %c0_i32_8 = arith.constant 0 : i32
    %9 = tpu.memref_slice %arg3[%c0_i32_6, %c0_i32_7, %c0_i32_8] : memref<1x1x256xi32, #tpu.memory_space<vmem>> -> memref<1x1x256xi32, #tpu.memory_space<vmem>>
    %10 = tpu.memref_squeeze %9 : memref<1x1x256xi32, #tpu.memory_space<vmem>> -> memref<1x256xi32, #tpu.memory_space<vmem>>
    %c0_9 = arith.constant 0 : index
    %c0_10 = arith.constant 0 : index
    %11 = vector.load %10[%c0_9, %c0_10] : memref<1x256xi32, #tpu.memory_space<vmem>>, vector<1x256xi32>
    %c-100_i32 = arith.constant -100 : i32
    %12 = vector.broadcast %c-100_i32 : i32 to vector<1x256xi32>
    %13 = arith.cmpi ne, %8, %12 : vector<1x256xi32>
    %c1_i32 = arith.constant 1 : i32
    %14 = vector.broadcast %c1_i32 : i32 to vector<1x256xi32>
    %15 = arith.cmpi eq, %8, %14 : vector<1x256xi32>
    %c0_i32_11 = arith.constant 0 : i32
    %16 = vector.broadcast %c0_i32_11 : i32 to vector<1x256xi32>
    %17 = arith.select %15, %16, %11 : vector<1x256xi1>, vector<1x256xi32>
    %18 = arith.sitofp %17 : vector<1x256xi32> to vector<1x256xf32>
    %cst_12 = arith.constant 3.000000e+38 : f32
    %19 = vector.broadcast %cst_12 : f32 to vector<1x256xf32>
    %20 = arith.select %13, %18, %19 : vector<1x256xi1>, vector<1x256xf32>
    %c8_i32 = arith.constant 8 : i32
    %21 = vector.broadcast %c8_i32 : i32 to vector<1x256xi32>
    %cst_13 = arith.constant dense<0x7F800000> : vector<1xf32>
    %22 = vector.multi_reduction <minimumf>, %20, %cst_13 [1] : vector<1x256xf32> to vector<1xf32>
    %23 = vector.shape_cast %22 : vector<1xf32> to vector<1x1xf32>
    %24 = vector.broadcast %23 : vector<1x1xf32> to vector<1x256xf32>
    %25 = arith.cmpf oeq, %20, %24 : vector<1x256xf32>
    %cst_14 = arith.constant 3.000000e+38 : f32
    %26 = vector.broadcast %cst_14 : f32 to vector<1x1xf32>
    %27 = arith.cmpf olt, %23, %26 : vector<1x1xf32>
    %28 = vector.broadcast %27 : vector<1x1xi1> to vector<1x256xi1>
    %29 = arith.andi %25, %28 : vector<1x256xi1>
    %c0_i32_15 = arith.constant 0 : i32
    %30 = vector.broadcast %c0_i32_15 : i32 to vector<1x256xi32>
    %31 = arith.select %29, %30, %21 : vector<1x256xi1>, vector<1x256xi32>
    %32 = vector.broadcast %23 : vector<1x1xf32> to vector<1x256xf32>
    %33 = arith.cmpf oeq, %20, %32 : vector<1x256xf32>
    %cst_16 = arith.constant 3.000000e+38 : f32
    %34 = vector.broadcast %cst_16 : f32 to vector<1x256xf32>
    %35 = arith.select %33, %34, %20 : vector<1x256xi1>, vector<1x256xf32>
    %cst_17 = arith.constant dense<0x7F800000> : vector<1xf32>
    %36 = vector.multi_reduction <minimumf>, %35, %cst_17 [1] : vector<1x256xf32> to vector<1xf32>
    %37 = vector.shape_cast %36 : vector<1xf32> to vector<1x1xf32>
    %38 = vector.broadcast %37 : vector<1x1xf32> to vector<1x256xf32>
    %39 = arith.cmpf oeq, %20, %38 : vector<1x256xf32>
    %cst_18 = arith.constant 3.000000e+38 : f32
    %40 = vector.broadcast %cst_18 : f32 to vector<1x1xf32>
    %41 = arith.cmpf olt, %37, %40 : vector<1x1xf32>
    %42 = vector.broadcast %41 : vector<1x1xi1> to vector<1x256xi1>
    %43 = arith.andi %39, %42 : vector<1x256xi1>
    %c1_i32_19 = arith.constant 1 : i32
    %44 = vector.broadcast %c1_i32_19 : i32 to vector<1x256xi32>
    %45 = arith.select %43, %44, %31 : vector<1x256xi1>, vector<1x256xi32>
    %46 = vector.broadcast %37 : vector<1x1xf32> to vector<1x256xf32>
    %47 = arith.cmpf oeq, %35, %46 : vector<1x256xf32>
    %cst_20 = arith.constant 3.000000e+38 : f32
    %48 = vector.broadcast %cst_20 : f32 to vector<1x256xf32>
    %49 = arith.select %47, %48, %35 : vector<1x256xi1>, vector<1x256xf32>
    %cst_21 = arith.constant dense<0x7F800000> : vector<1xf32>
    %50 = vector.multi_reduction <minimumf>, %49, %cst_21 [1] : vector<1x256xf32> to vector<1xf32>
    %51 = vector.shape_cast %50 : vector<1xf32> to vector<1x1xf32>
    %52 = vector.broadcast %51 : vector<1x1xf32> to vector<1x256xf32>
    %53 = arith.cmpf oeq, %20, %52 : vector<1x256xf32>
    %cst_22 = arith.constant 3.000000e+38 : f32
    %54 = vector.broadcast %cst_22 : f32 to vector<1x1xf32>
    %55 = arith.cmpf olt, %51, %54 : vector<1x1xf32>
    %56 = vector.broadcast %55 : vector<1x1xi1> to vector<1x256xi1>
    %57 = arith.andi %53, %56 : vector<1x256xi1>
    %c2_i32 = arith.constant 2 : i32
    %58 = vector.broadcast %c2_i32 : i32 to vector<1x256xi32>
    %59 = arith.select %57, %58, %45 : vector<1x256xi1>, vector<1x256xi32>
    %60 = vector.broadcast %51 : vector<1x1xf32> to vector<1x256xf32>
    %61 = arith.cmpf oeq, %49, %60 : vector<1x256xf32>
    %cst_23 = arith.constant 3.000000e+38 : f32
    %62 = vector.broadcast %cst_23 : f32 to vector<1x256xf32>
    %63 = arith.select %61, %62, %49 : vector<1x256xi1>, vector<1x256xf32>
    %cst_24 = arith.constant dense<0x7F800000> : vector<1xf32>
    %64 = vector.multi_reduction <minimumf>, %63, %cst_24 [1] : vector<1x256xf32> to vector<1xf32>
    %65 = vector.shape_cast %64 : vector<1xf32> to vector<1x1xf32>
    %66 = vector.broadcast %65 : vector<1x1xf32> to vector<1x256xf32>
    %67 = arith.cmpf oeq, %20, %66 : vector<1x256xf32>
    %cst_25 = arith.constant 3.000000e+38 : f32
    %68 = vector.broadcast %cst_25 : f32 to vector<1x1xf32>
    %69 = arith.cmpf olt, %65, %68 : vector<1x1xf32>
    %70 = vector.broadcast %69 : vector<1x1xi1> to vector<1x256xi1>
    %71 = arith.andi %67, %70 : vector<1x256xi1>
    %c3_i32 = arith.constant 3 : i32
    %72 = vector.broadcast %c3_i32 : i32 to vector<1x256xi32>
    %73 = arith.select %71, %72, %59 : vector<1x256xi1>, vector<1x256xi32>
    %74 = vector.broadcast %65 : vector<1x1xf32> to vector<1x256xf32>
    %75 = arith.cmpf oeq, %63, %74 : vector<1x256xf32>
    %cst_26 = arith.constant 3.000000e+38 : f32
    %76 = vector.broadcast %cst_26 : f32 to vector<1x256xf32>
    %77 = arith.select %75, %76, %63 : vector<1x256xi1>, vector<1x256xf32>
    %cst_27 = arith.constant dense<0x7F800000> : vector<1xf32>
    %78 = vector.multi_reduction <minimumf>, %77, %cst_27 [1] : vector<1x256xf32> to vector<1xf32>
    %79 = vector.shape_cast %78 : vector<1xf32> to vector<1x1xf32>
    %80 = vector.broadcast %79 : vector<1x1xf32> to vector<1x256xf32>
    %81 = arith.cmpf oeq, %20, %80 : vector<1x256xf32>
    %cst_28 = arith.constant 3.000000e+38 : f32
    %82 = vector.broadcast %cst_28 : f32 to vector<1x1xf32>
    %83 = arith.cmpf olt, %79, %82 : vector<1x1xf32>
    %84 = vector.broadcast %83 : vector<1x1xi1> to vector<1x256xi1>
    %85 = arith.andi %81, %84 : vector<1x256xi1>
    %c4_i32 = arith.constant 4 : i32
    %86 = vector.broadcast %c4_i32 : i32 to vector<1x256xi32>
    %87 = arith.select %85, %86, %73 : vector<1x256xi1>, vector<1x256xi32>
    %88 = vector.broadcast %79 : vector<1x1xf32> to vector<1x256xf32>
    %89 = arith.cmpf oeq, %77, %88 : vector<1x256xf32>
    %cst_29 = arith.constant 3.000000e+38 : f32
    %90 = vector.broadcast %cst_29 : f32 to vector<1x256xf32>
    %91 = arith.select %89, %90, %77 : vector<1x256xi1>, vector<1x256xf32>
    %cst_30 = arith.constant dense<0x7F800000> : vector<1xf32>
    %92 = vector.multi_reduction <minimumf>, %91, %cst_30 [1] : vector<1x256xf32> to vector<1xf32>
    %93 = vector.shape_cast %92 : vector<1xf32> to vector<1x1xf32>
    %94 = vector.broadcast %93 : vector<1x1xf32> to vector<1x256xf32>
    %95 = arith.cmpf oeq, %20, %94 : vector<1x256xf32>
    %cst_31 = arith.constant 3.000000e+38 : f32
    %96 = vector.broadcast %cst_31 : f32 to vector<1x1xf32>
    %97 = arith.cmpf olt, %93, %96 : vector<1x1xf32>
    %98 = vector.broadcast %97 : vector<1x1xi1> to vector<1x256xi1>
    %99 = arith.andi %95, %98 : vector<1x256xi1>
    %c5_i32 = arith.constant 5 : i32
    %100 = vector.broadcast %c5_i32 : i32 to vector<1x256xi32>
    %101 = arith.select %99, %100, %87 : vector<1x256xi1>, vector<1x256xi32>
    %102 = vector.broadcast %93 : vector<1x1xf32> to vector<1x256xf32>
    %103 = arith.cmpf oeq, %91, %102 : vector<1x256xf32>
    %cst_32 = arith.constant 3.000000e+38 : f32
    %104 = vector.broadcast %cst_32 : f32 to vector<1x256xf32>
    %105 = arith.select %103, %104, %91 : vector<1x256xi1>, vector<1x256xf32>
    %cst_33 = arith.constant dense<0x7F800000> : vector<1xf32>
    %106 = vector.multi_reduction <minimumf>, %105, %cst_33 [1] : vector<1x256xf32> to vector<1xf32>
    %107 = vector.shape_cast %106 : vector<1xf32> to vector<1x1xf32>
    %108 = vector.broadcast %107 : vector<1x1xf32> to vector<1x256xf32>
    %109 = arith.cmpf oeq, %20, %108 : vector<1x256xf32>
    %cst_34 = arith.constant 3.000000e+38 : f32
    %110 = vector.broadcast %cst_34 : f32 to vector<1x1xf32>
    %111 = arith.cmpf olt, %107, %110 : vector<1x1xf32>
    %112 = vector.broadcast %111 : vector<1x1xi1> to vector<1x256xi1>
    %113 = arith.andi %109, %112 : vector<1x256xi1>
    %c6_i32 = arith.constant 6 : i32
    %114 = vector.broadcast %c6_i32 : i32 to vector<1x256xi32>
    %115 = arith.select %113, %114, %101 : vector<1x256xi1>, vector<1x256xi32>
    %116 = vector.broadcast %107 : vector<1x1xf32> to vector<1x256xf32>
    %117 = arith.cmpf oeq, %105, %116 : vector<1x256xf32>
    %cst_35 = arith.constant 3.000000e+38 : f32
    %118 = vector.broadcast %cst_35 : f32 to vector<1x256xf32>
    %119 = arith.select %117, %118, %105 : vector<1x256xi1>, vector<1x256xf32>
    %cst_36 = arith.constant dense<0x7F800000> : vector<1xf32>
    %120 = vector.multi_reduction <minimumf>, %119, %cst_36 [1] : vector<1x256xf32> to vector<1xf32>
    %121 = vector.shape_cast %120 : vector<1xf32> to vector<1x1xf32>
    %122 = vector.broadcast %121 : vector<1x1xf32> to vector<1x256xf32>
    %123 = arith.cmpf oeq, %20, %122 : vector<1x256xf32>
    %cst_37 = arith.constant 3.000000e+38 : f32
    %124 = vector.broadcast %cst_37 : f32 to vector<1x1xf32>
    %125 = arith.cmpf olt, %121, %124 : vector<1x1xf32>
    %126 = vector.broadcast %125 : vector<1x1xi1> to vector<1x256xi1>
    %127 = arith.andi %123, %126 : vector<1x256xi1>
    %c7_i32 = arith.constant 7 : i32
    %128 = vector.broadcast %c7_i32 : i32 to vector<1x256xi32>
    %129 = arith.select %127, %128, %115 : vector<1x256xi1>, vector<1x256xi32>
    %130 = vector.broadcast %121 : vector<1x1xf32> to vector<1x256xf32>
    %131 = arith.cmpf oeq, %119, %130 : vector<1x256xf32>
    %cst_38 = arith.constant 3.000000e+38 : f32
    %132 = vector.broadcast %cst_38 : f32 to vector<1x256xf32>
    %133 = arith.select %131, %132, %119 : vector<1x256xi1>, vector<1x256xf32>
    %cst_39 = arith.constant 3.000000e+38 : f32
    %134 = vector.broadcast %cst_39 : f32 to vector<1x256xf32>
    %135 = arith.cmpf olt, %133, %134 : vector<1x256xf32>
    %c7_i32_40 = arith.constant 7 : i32
    %136 = vector.broadcast %c7_i32_40 : i32 to vector<1x256xi32>
    %137 = arith.select %135, %136, %129 : vector<1x256xi1>, vector<1x256xi32>
    %138 = vector.broadcast %137 : vector<1x256xi32> to vector<8x256xi32>
    %139 = arith.cmpi eq, %138, %0 : vector<8x256xi32>
    %cst_41 = arith.constant 1.000000e+00 : f32
    %cst_42 = arith.constant 0.000000e+00 : f32
    %140 = vector.broadcast %cst_41 : f32 to vector<8x256xf32>
    %141 = vector.broadcast %cst_42 : f32 to vector<8x256xf32>
    %142 = arith.select %139, %140, %141 : vector<8x256xi1>, vector<8x256xf32>
    %cst_43 = arith.constant dense<0.000000e+00> : vector<8xf32>
    %143 = vector.multi_reduction <add>, %142, %cst_43 [1] : vector<8x256xf32> to vector<8xf32>
    %144 = vector.shape_cast %143 : vector<8xf32> to vector<8x1xf32>
    %cst_44 = arith.constant 9.99999993E-9 : f32
    %145 = vector.broadcast %cst_44 : f32 to vector<8x1xf32>
    %146 = arith.addf %144, %145 : vector<8x1xf32>
    %147 = tpu.reciprocal %146 {approx = true} : vector<8x1xf32> -> vector<8x1xf32>
    %c0_i32_45 = arith.constant 0 : i32
    %c0_i32_46 = arith.constant 0 : i32
    %c0_i32_47 = arith.constant 0 : i32
    %148 = tpu.memref_slice %arg1[%c0_i32_45, %c0_i32_46, %c0_i32_47] : memref<1x4x256xf32, #tpu.memory_space<vmem>> -> memref<1x4x256xf32, #tpu.memory_space<vmem>>
    %149 = tpu.memref_squeeze %148 : memref<1x4x256xf32, #tpu.memory_space<vmem>> -> memref<4x256xf32, #tpu.memory_space<vmem>>
    %c0_48 = arith.constant 0 : index
    %c0_49 = arith.constant 0 : index
    %150 = vector.load %149[%c0_48, %c0_49] : memref<4x256xf32, #tpu.memory_space<vmem>>, vector<1x256xf32>
    %151 = vector.shape_cast %150 : vector<1x256xf32> to vector<1x256xf32>
    %152 = vector.broadcast %151 : vector<1x256xf32> to vector<8x256xf32>
    %153 = arith.mulf %142, %152 : vector<8x256xf32>
    %cst_50 = arith.constant dense<0.000000e+00> : vector<8xf32>
    %154 = vector.multi_reduction <add>, %153, %cst_50 [1] : vector<8x256xf32> to vector<8xf32>
    %155 = vector.shape_cast %154 : vector<8xf32> to vector<8x1xf32>
    %156 = arith.mulf %155, %147 : vector<8x1xf32>
    %157 = vector.broadcast %156 : vector<8x1xf32> to vector<8x256xf32>
    %158 = arith.subf %152, %157 : vector<8x256xf32>
    %159 = math.absf %158 : vector<8x256xf32>
    %c0_i32_51 = arith.constant 0 : i32
    %c0_i32_52 = arith.constant 0 : i32
    %c0_i32_53 = arith.constant 0 : i32
    %160 = tpu.memref_slice %arg1[%c0_i32_51, %c0_i32_52, %c0_i32_53] : memref<1x4x256xf32, #tpu.memory_space<vmem>> -> memref<1x4x256xf32, #tpu.memory_space<vmem>>
    %161 = tpu.memref_squeeze %160 : memref<1x4x256xf32, #tpu.memory_space<vmem>> -> memref<4x256xf32, #tpu.memory_space<vmem>>
    %c1 = arith.constant 1 : index
    %c0_54 = arith.constant 0 : index
    %162 = vector.load %161[%c1, %c0_54] : memref<4x256xf32, #tpu.memory_space<vmem>>, vector<1x256xf32>
    %163 = vector.shape_cast %162 : vector<1x256xf32> to vector<1x256xf32>
    %164 = vector.broadcast %163 : vector<1x256xf32> to vector<8x256xf32>
    %165 = arith.mulf %142, %164 : vector<8x256xf32>
    %cst_55 = arith.constant dense<0.000000e+00> : vector<8xf32>
    %166 = vector.multi_reduction <add>, %165, %cst_55 [1] : vector<8x256xf32> to vector<8xf32>
    %167 = vector.shape_cast %166 : vector<8xf32> to vector<8x1xf32>
    %168 = arith.mulf %167, %147 : vector<8x1xf32>
    %169 = vector.broadcast %168 : vector<8x1xf32> to vector<8x256xf32>
    %170 = arith.subf %164, %169 : vector<8x256xf32>
    %171 = math.absf %170 : vector<8x256xf32>
    %172 = arith.addf %159, %171 : vector<8x256xf32>
    %c0_i32_56 = arith.constant 0 : i32
    %c0_i32_57 = arith.constant 0 : i32
    %c0_i32_58 = arith.constant 0 : i32
    %173 = tpu.memref_slice %arg1[%c0_i32_56, %c0_i32_57, %c0_i32_58] : memref<1x4x256xf32, #tpu.memory_space<vmem>> -> memref<1x4x256xf32, #tpu.memory_space<vmem>>
    %174 = tpu.memref_squeeze %173 : memref<1x4x256xf32, #tpu.memory_space<vmem>> -> memref<4x256xf32, #tpu.memory_space<vmem>>
    %c2 = arith.constant 2 : index
    %c0_59 = arith.constant 0 : index
    %175 = vector.load %174[%c2, %c0_59] : memref<4x256xf32, #tpu.memory_space<vmem>>, vector<1x256xf32>
    %176 = vector.shape_cast %175 : vector<1x256xf32> to vector<1x256xf32>
    %177 = vector.broadcast %176 : vector<1x256xf32> to vector<8x256xf32>
    %178 = arith.mulf %142, %177 : vector<8x256xf32>
    %cst_60 = arith.constant dense<0.000000e+00> : vector<8xf32>
    %179 = vector.multi_reduction <add>, %178, %cst_60 [1] : vector<8x256xf32> to vector<8xf32>
    %180 = vector.shape_cast %179 : vector<8xf32> to vector<8x1xf32>
    %181 = arith.mulf %180, %147 : vector<8x1xf32>
    %182 = vector.broadcast %181 : vector<8x1xf32> to vector<8x256xf32>
    %183 = arith.subf %177, %182 : vector<8x256xf32>
    %184 = math.absf %183 : vector<8x256xf32>
    %185 = arith.addf %172, %184 : vector<8x256xf32>
    %c0_i32_61 = arith.constant 0 : i32
    %c0_i32_62 = arith.constant 0 : i32
    %c0_i32_63 = arith.constant 0 : i32
    %186 = tpu.memref_slice %arg1[%c0_i32_61, %c0_i32_62, %c0_i32_63] : memref<1x4x256xf32, #tpu.memory_space<vmem>> -> memref<1x4x256xf32, #tpu.memory_space<vmem>>
    %187 = tpu.memref_squeeze %186 : memref<1x4x256xf32, #tpu.memory_space<vmem>> -> memref<4x256xf32, #tpu.memory_space<vmem>>
    %c3 = arith.constant 3 : index
    %c0_64 = arith.constant 0 : index
    %188 = vector.load %187[%c3, %c0_64] : memref<4x256xf32, #tpu.memory_space<vmem>>, vector<1x256xf32>
    %189 = vector.shape_cast %188 : vector<1x256xf32> to vector<1x256xf32>
    %190 = vector.broadcast %189 : vector<1x256xf32> to vector<8x256xf32>
    %191 = arith.mulf %142, %190 : vector<8x256xf32>
    %cst_65 = arith.constant dense<0.000000e+00> : vector<8xf32>
    %192 = vector.multi_reduction <add>, %191, %cst_65 [1] : vector<8x256xf32> to vector<8xf32>
    %193 = vector.shape_cast %192 : vector<8xf32> to vector<8x1xf32>
    %194 = arith.mulf %193, %147 : vector<8x1xf32>
    %195 = vector.broadcast %194 : vector<8x1xf32> to vector<8x256xf32>
    %196 = arith.subf %190, %195 : vector<8x256xf32>
    %197 = math.absf %196 : vector<8x256xf32>
    %198 = arith.addf %185, %197 : vector<8x256xf32>
    %cst_66 = arith.constant 5.000000e-01 : f32
    %199 = vector.broadcast %cst_66 : f32 to vector<8x256xf32>
    %200 = arith.subf %198, %199 : vector<8x256xf32>
    %cst_67 = arith.constant 0.000000e+00 : f32
    %201 = vector.broadcast %cst_67 : f32 to vector<8x256xf32>
    %202 = arith.maximumf %200, %201 : vector<8x256xf32>
    %203 = arith.mulf %202, %202 : vector<8x256xf32>
    %204 = arith.mulf %203, %142 : vector<8x256xf32>
    %cst_68 = arith.constant dense<0.000000e+00> : vector<8xf32>
    %205 = vector.multi_reduction <add>, %204, %cst_68 [1] : vector<8x256xf32> to vector<8xf32>
    %206 = vector.shape_cast %205 : vector<8xf32> to vector<8x1xf32>
    %207 = arith.mulf %206, %147 : vector<8x1xf32>
    %cst_69 = arith.constant 5.000000e-01 : f32
    %208 = vector.broadcast %cst_69 : f32 to vector<8x1xf32>
    %209 = arith.cmpf ogt, %144, %208 : vector<8x1xf32>
    %cst_70 = arith.constant 1.000000e+00 : f32
    %cst_71 = arith.constant 0.000000e+00 : f32
    %210 = vector.broadcast %cst_70 : f32 to vector<8x1xf32>
    %211 = vector.broadcast %cst_71 : f32 to vector<8x1xf32>
    %212 = arith.select %209, %210, %211 : vector<8x1xi1>, vector<8x1xf32>
    %213 = vector.shape_cast %212 : vector<8x1xf32> to vector<1x8x1xf32>
    %cst_72 = arith.constant dense<0.000000e+00> : vector<1xf32>
    %214 = vector.multi_reduction <add>, %213, %cst_72 [1, 2] : vector<1x8x1xf32> to vector<1xf32>
    %215 = vector.shape_cast %214 : vector<1xf32> to vector<1x1x1xf32>
    %216 = vector.extract %215[0, 0, 0] : f32 from vector<1x1x1xf32>
    %217 = vector.broadcast %216 : f32 to vector<1x1xf32>
    %cst_73 = arith.constant 1.000000e+00 : f32
    %218 = vector.broadcast %cst_73 : f32 to vector<1x1xf32>
    %219 = arith.maximumf %217, %218 : vector<1x1xf32>
    %220 = tpu.reciprocal %219 {approx = true} : vector<1x1xf32> -> vector<1x1xf32>
    %221 = vector.shape_cast %207 : vector<8x1xf32> to vector<1x8x1xf32>
    %cst_74 = arith.constant dense<0.000000e+00> : vector<1xf32>
    %222 = vector.multi_reduction <add>, %221, %cst_74 [1, 2] : vector<1x8x1xf32> to vector<1xf32>
    %223 = vector.shape_cast %222 : vector<1xf32> to vector<1x1x1xf32>
    %224 = vector.extract %223[0, 0, 0] : f32 from vector<1x1x1xf32>
    %225 = vector.broadcast %224 : f32 to vector<1x1xf32>
    %cst_75 = arith.constant 5.000000e-01 : f32
    %226 = vector.broadcast %cst_75 : f32 to vector<1x1xf32>
    %227 = arith.cmpf ogt, %217, %226 : vector<1x1xf32>
    %228 = arith.mulf %225, %220 : vector<1x1xf32>
    %cst_76 = arith.constant 0.000000e+00 : f32
    %229 = vector.broadcast %cst_76 : f32 to vector<1x1xf32>
    %230 = arith.select %227, %228, %229 : vector<1x1xi1>, vector<1x1xf32>
    %c4_i32_77 = arith.constant 4 : i32
    %231 = vector.broadcast %c4_i32_77 : i32 to vector<8x5xi32>
    %232 = arith.cmpi eq, %1, %231 : vector<8x5xi32>
    %cst_78 = arith.constant 0.000000e+00 : f32
    %233 = vector.shape_cast %212 : vector<8x1xf32> to vector<8x1xf32>
    %234 = vector.broadcast %233 : vector<8x1xf32> to vector<8x5xf32>
    %235 = vector.broadcast %cst_78 : f32 to vector<8x5xf32>
    %236 = arith.select %232, %234, %235 : vector<8x5xi1>, vector<8x5xf32>
    %c0_i32_79 = arith.constant 0 : i32
    %237 = vector.broadcast %c0_i32_79 : i32 to vector<8x5xi32>
    %238 = arith.cmpi eq, %1, %237 : vector<8x5xi32>
    %cst_80 = arith.constant 0.000000e+00 : f32
    %239 = vector.shape_cast %156 : vector<8x1xf32> to vector<8x1xf32>
    %240 = vector.broadcast %239 : vector<8x1xf32> to vector<8x5xf32>
    %241 = vector.broadcast %cst_80 : f32 to vector<8x5xf32>
    %242 = arith.select %238, %240, %241 : vector<8x5xi1>, vector<8x5xf32>
    %243 = arith.addf %236, %242 : vector<8x5xf32>
    %c1_i32_81 = arith.constant 1 : i32
    %244 = vector.broadcast %c1_i32_81 : i32 to vector<8x5xi32>
    %245 = arith.cmpi eq, %1, %244 : vector<8x5xi32>
    %cst_82 = arith.constant 0.000000e+00 : f32
    %246 = vector.shape_cast %168 : vector<8x1xf32> to vector<8x1xf32>
    %247 = vector.broadcast %246 : vector<8x1xf32> to vector<8x5xf32>
    %248 = vector.broadcast %cst_82 : f32 to vector<8x5xf32>
    %249 = arith.select %245, %247, %248 : vector<8x5xi1>, vector<8x5xf32>
    %250 = arith.addf %243, %249 : vector<8x5xf32>
    %c2_i32_83 = arith.constant 2 : i32
    %251 = vector.broadcast %c2_i32_83 : i32 to vector<8x5xi32>
    %252 = arith.cmpi eq, %1, %251 : vector<8x5xi32>
    %cst_84 = arith.constant 0.000000e+00 : f32
    %253 = vector.shape_cast %181 : vector<8x1xf32> to vector<8x1xf32>
    %254 = vector.broadcast %253 : vector<8x1xf32> to vector<8x5xf32>
    %255 = vector.broadcast %cst_84 : f32 to vector<8x5xf32>
    %256 = arith.select %252, %254, %255 : vector<8x5xi1>, vector<8x5xf32>
    %257 = arith.addf %250, %256 : vector<8x5xf32>
    %c3_i32_85 = arith.constant 3 : i32
    %258 = vector.broadcast %c3_i32_85 : i32 to vector<8x5xi32>
    %259 = arith.cmpi eq, %1, %258 : vector<8x5xi32>
    %cst_86 = arith.constant 0.000000e+00 : f32
    %260 = vector.shape_cast %194 : vector<8x1xf32> to vector<8x1xf32>
    %261 = vector.broadcast %260 : vector<8x1xf32> to vector<8x5xf32>
    %262 = vector.broadcast %cst_86 : f32 to vector<8x5xf32>
    %263 = arith.select %259, %261, %262 : vector<8x5xi1>, vector<8x5xf32>
    %264 = arith.addf %257, %263 : vector<8x5xf32>
    %cst_87 = arith.constant 0.000000e+00 : f32
    %265 = vector.broadcast %cst_87 : f32 to vector<8x1xf32>
    %c1_i32_88 = arith.constant 1 : i32
    %266 = tpu.dynamic_rotate %264 by %c1_i32_88 dim 0 : vector<8x5xf32>, i32 -> vector<8x5xf32>
    %267 = arith.subf %264, %266 : vector<8x5xf32>
    %268 = math.absf %267 : vector<8x5xf32>
    %cst_89 = arith.constant dense<0.000000e+00> : vector<8xf32>
    %269 = vector.multi_reduction <add>, %268, %cst_89 [1] : vector<8x5xf32> to vector<8xf32>
    %270 = vector.shape_cast %269 : vector<8xf32> to vector<8x1xf32>
    %271 = vector.extract_strided_slice %266 {offsets = [0, 4], sizes = [8, 1], strides = [1, 1]} : vector<8x5xf32> to vector<8x1xf32>
    %cst_90 = arith.constant 3.000000e+00 : f32
    %272 = vector.broadcast %cst_90 : f32 to vector<8x1xf32>
    %273 = arith.subf %272, %270 : vector<8x1xf32>
    %cst_91 = arith.constant 0.000000e+00 : f32
    %274 = vector.broadcast %cst_91 : f32 to vector<8x1xf32>
    %275 = arith.maximumf %273, %274 : vector<8x1xf32>
    %276 = arith.mulf %275, %275 : vector<8x1xf32>
    %277 = arith.mulf %276, %212 : vector<8x1xf32>
    %278 = arith.mulf %277, %271 : vector<8x1xf32>
    %279 = arith.addf %265, %278 : vector<8x1xf32>
    %c2_i32_92 = arith.constant 2 : i32
    %280 = tpu.dynamic_rotate %264 by %c2_i32_92 dim 0 : vector<8x5xf32>, i32 -> vector<8x5xf32>
    %281 = arith.subf %264, %280 : vector<8x5xf32>
    %282 = math.absf %281 : vector<8x5xf32>
    %cst_93 = arith.constant dense<0.000000e+00> : vector<8xf32>
    %283 = vector.multi_reduction <add>, %282, %cst_93 [1] : vector<8x5xf32> to vector<8xf32>
    %284 = vector.shape_cast %283 : vector<8xf32> to vector<8x1xf32>
    %285 = vector.extract_strided_slice %280 {offsets = [0, 4], sizes = [8, 1], strides = [1, 1]} : vector<8x5xf32> to vector<8x1xf32>
    %cst_94 = arith.constant 3.000000e+00 : f32
    %286 = vector.broadcast %cst_94 : f32 to vector<8x1xf32>
    %287 = arith.subf %286, %284 : vector<8x1xf32>
    %cst_95 = arith.constant 0.000000e+00 : f32
    %288 = vector.broadcast %cst_95 : f32 to vector<8x1xf32>
    %289 = arith.maximumf %287, %288 : vector<8x1xf32>
    %290 = arith.mulf %289, %289 : vector<8x1xf32>
    %291 = arith.mulf %290, %212 : vector<8x1xf32>
    %292 = arith.mulf %291, %285 : vector<8x1xf32>
    %293 = arith.addf %279, %292 : vector<8x1xf32>
    %c3_i32_96 = arith.constant 3 : i32
    %294 = tpu.dynamic_rotate %264 by %c3_i32_96 dim 0 : vector<8x5xf32>, i32 -> vector<8x5xf32>
    %295 = arith.subf %264, %294 : vector<8x5xf32>
    %296 = math.absf %295 : vector<8x5xf32>
    %cst_97 = arith.constant dense<0.000000e+00> : vector<8xf32>
    %297 = vector.multi_reduction <add>, %296, %cst_97 [1] : vector<8x5xf32> to vector<8xf32>
    %298 = vector.shape_cast %297 : vector<8xf32> to vector<8x1xf32>
    %299 = vector.extract_strided_slice %294 {offsets = [0, 4], sizes = [8, 1], strides = [1, 1]} : vector<8x5xf32> to vector<8x1xf32>
    %cst_98 = arith.constant 3.000000e+00 : f32
    %300 = vector.broadcast %cst_98 : f32 to vector<8x1xf32>
    %301 = arith.subf %300, %298 : vector<8x1xf32>
    %cst_99 = arith.constant 0.000000e+00 : f32
    %302 = vector.broadcast %cst_99 : f32 to vector<8x1xf32>
    %303 = arith.maximumf %301, %302 : vector<8x1xf32>
    %304 = arith.mulf %303, %303 : vector<8x1xf32>
    %305 = arith.mulf %304, %212 : vector<8x1xf32>
    %306 = arith.mulf %305, %299 : vector<8x1xf32>
    %307 = arith.addf %293, %306 : vector<8x1xf32>
    %c4_i32_100 = arith.constant 4 : i32
    %308 = tpu.dynamic_rotate %264 by %c4_i32_100 dim 0 : vector<8x5xf32>, i32 -> vector<8x5xf32>
    %309 = arith.subf %264, %308 : vector<8x5xf32>
    %310 = math.absf %309 : vector<8x5xf32>
    %cst_101 = arith.constant dense<0.000000e+00> : vector<8xf32>
    %311 = vector.multi_reduction <add>, %310, %cst_101 [1] : vector<8x5xf32> to vector<8xf32>
    %312 = vector.shape_cast %311 : vector<8xf32> to vector<8x1xf32>
    %313 = vector.extract_strided_slice %308 {offsets = [0, 4], sizes = [8, 1], strides = [1, 1]} : vector<8x5xf32> to vector<8x1xf32>
    %cst_102 = arith.constant 3.000000e+00 : f32
    %314 = vector.broadcast %cst_102 : f32 to vector<8x1xf32>
    %315 = arith.subf %314, %312 : vector<8x1xf32>
    %cst_103 = arith.constant 0.000000e+00 : f32
    %316 = vector.broadcast %cst_103 : f32 to vector<8x1xf32>
    %317 = arith.maximumf %315, %316 : vector<8x1xf32>
    %318 = arith.mulf %317, %317 : vector<8x1xf32>
    %319 = arith.mulf %318, %212 : vector<8x1xf32>
    %320 = arith.mulf %319, %313 : vector<8x1xf32>
    %321 = arith.addf %307, %320 : vector<8x1xf32>
    %c5_i32_104 = arith.constant 5 : i32
    %322 = tpu.dynamic_rotate %264 by %c5_i32_104 dim 0 : vector<8x5xf32>, i32 -> vector<8x5xf32>
    %323 = arith.subf %264, %322 : vector<8x5xf32>
    %324 = math.absf %323 : vector<8x5xf32>
    %cst_105 = arith.constant dense<0.000000e+00> : vector<8xf32>
    %325 = vector.multi_reduction <add>, %324, %cst_105 [1] : vector<8x5xf32> to vector<8xf32>
    %326 = vector.shape_cast %325 : vector<8xf32> to vector<8x1xf32>
    %327 = vector.extract_strided_slice %322 {offsets = [0, 4], sizes = [8, 1], strides = [1, 1]} : vector<8x5xf32> to vector<8x1xf32>
    %cst_106 = arith.constant 3.000000e+00 : f32
    %328 = vector.broadcast %cst_106 : f32 to vector<8x1xf32>
    %329 = arith.subf %328, %326 : vector<8x1xf32>
    %cst_107 = arith.constant 0.000000e+00 : f32
    %330 = vector.broadcast %cst_107 : f32 to vector<8x1xf32>
    %331 = arith.maximumf %329, %330 : vector<8x1xf32>
    %332 = arith.mulf %331, %331 : vector<8x1xf32>
    %333 = arith.mulf %332, %212 : vector<8x1xf32>
    %334 = arith.mulf %333, %327 : vector<8x1xf32>
    %335 = arith.addf %321, %334 : vector<8x1xf32>
    %c6_i32_108 = arith.constant 6 : i32
    %336 = tpu.dynamic_rotate %264 by %c6_i32_108 dim 0 : vector<8x5xf32>, i32 -> vector<8x5xf32>
    %337 = arith.subf %264, %336 : vector<8x5xf32>
    %338 = math.absf %337 : vector<8x5xf32>
    %cst_109 = arith.constant dense<0.000000e+00> : vector<8xf32>
    %339 = vector.multi_reduction <add>, %338, %cst_109 [1] : vector<8x5xf32> to vector<8xf32>
    %340 = vector.shape_cast %339 : vector<8xf32> to vector<8x1xf32>
    %341 = vector.extract_strided_slice %336 {offsets = [0, 4], sizes = [8, 1], strides = [1, 1]} : vector<8x5xf32> to vector<8x1xf32>
    %cst_110 = arith.constant 3.000000e+00 : f32
    %342 = vector.broadcast %cst_110 : f32 to vector<8x1xf32>
    %343 = arith.subf %342, %340 : vector<8x1xf32>
    %cst_111 = arith.constant 0.000000e+00 : f32
    %344 = vector.broadcast %cst_111 : f32 to vector<8x1xf32>
    %345 = arith.maximumf %343, %344 : vector<8x1xf32>
    %346 = arith.mulf %345, %345 : vector<8x1xf32>
    %347 = arith.mulf %346, %212 : vector<8x1xf32>
    %348 = arith.mulf %347, %341 : vector<8x1xf32>
    %349 = arith.addf %335, %348 : vector<8x1xf32>
    %c7_i32_112 = arith.constant 7 : i32
    %350 = tpu.dynamic_rotate %264 by %c7_i32_112 dim 0 : vector<8x5xf32>, i32 -> vector<8x5xf32>
    %351 = arith.subf %264, %350 : vector<8x5xf32>
    %352 = math.absf %351 : vector<8x5xf32>
    %cst_113 = arith.constant dense<0.000000e+00> : vector<8xf32>
    %353 = vector.multi_reduction <add>, %352, %cst_113 [1] : vector<8x5xf32> to vector<8xf32>
    %354 = vector.shape_cast %353 : vector<8xf32> to vector<8x1xf32>
    %355 = vector.extract_strided_slice %350 {offsets = [0, 4], sizes = [8, 1], strides = [1, 1]} : vector<8x5xf32> to vector<8x1xf32>
    %cst_114 = arith.constant 3.000000e+00 : f32
    %356 = vector.broadcast %cst_114 : f32 to vector<8x1xf32>
    %357 = arith.subf %356, %354 : vector<8x1xf32>
    %cst_115 = arith.constant 0.000000e+00 : f32
    %358 = vector.broadcast %cst_115 : f32 to vector<8x1xf32>
    %359 = arith.maximumf %357, %358 : vector<8x1xf32>
    %360 = arith.mulf %359, %359 : vector<8x1xf32>
    %361 = arith.mulf %360, %212 : vector<8x1xf32>
    %362 = arith.mulf %361, %355 : vector<8x1xf32>
    %363 = arith.addf %349, %362 : vector<8x1xf32>
    %364 = vector.shape_cast %363 : vector<8x1xf32> to vector<1x8x1xf32>
    %cst_116 = arith.constant dense<0.000000e+00> : vector<1xf32>
    %365 = vector.multi_reduction <add>, %364, %cst_116 [1, 2] : vector<1x8x1xf32> to vector<1xf32>
    %366 = vector.shape_cast %365 : vector<1xf32> to vector<1x1x1xf32>
    %367 = vector.extract %366[0, 0, 0] : f32 from vector<1x1x1xf32>
    %368 = vector.broadcast %367 : f32 to vector<1x1xf32>
    %cst_117 = arith.constant 1.000000e+00 : f32
    %369 = vector.broadcast %cst_117 : f32 to vector<1x1xf32>
    %370 = arith.subf %217, %369 : vector<1x1xf32>
    %371 = arith.mulf %217, %370 : vector<1x1xf32>
    %cst_118 = arith.constant 1.000000e+00 : f32
    %372 = vector.broadcast %cst_118 : f32 to vector<1x1xf32>
    %373 = arith.maximumf %371, %372 : vector<1x1xf32>
    %cst_119 = arith.constant 1.500000e+00 : f32
    %374 = vector.broadcast %cst_119 : f32 to vector<1x1xf32>
    %375 = arith.cmpf ogt, %217, %374 : vector<1x1xf32>
    %376 = tpu.reciprocal %373 {approx = true} : vector<1x1xf32> -> vector<1x1xf32>
    %377 = arith.mulf %368, %376 : vector<1x1xf32>
    %cst_120 = arith.constant 0.000000e+00 : f32
    %378 = vector.broadcast %cst_120 : f32 to vector<1x1xf32>
    %379 = arith.select %375, %377, %378 : vector<1x1xi1>, vector<1x1xf32>
    %380 = math.absf %156 : vector<8x1xf32>
    %381 = math.absf %168 : vector<8x1xf32>
    %382 = arith.addf %380, %381 : vector<8x1xf32>
    %383 = math.absf %181 : vector<8x1xf32>
    %384 = arith.addf %382, %383 : vector<8x1xf32>
    %385 = math.absf %194 : vector<8x1xf32>
    %386 = arith.addf %384, %385 : vector<8x1xf32>
    %387 = arith.mulf %386, %212 : vector<8x1xf32>
    %388 = vector.shape_cast %387 : vector<8x1xf32> to vector<1x8x1xf32>
    %cst_121 = arith.constant dense<0.000000e+00> : vector<1xf32>
    %389 = vector.multi_reduction <add>, %388, %cst_121 [1, 2] : vector<1x8x1xf32> to vector<1xf32>
    %390 = vector.shape_cast %389 : vector<1xf32> to vector<1x1x1xf32>
    %391 = vector.extract %390[0, 0, 0] : f32 from vector<1x1x1xf32>
    %392 = vector.broadcast %391 : f32 to vector<1x1xf32>
    %cst_122 = arith.constant 5.000000e-01 : f32
    %393 = vector.broadcast %cst_122 : f32 to vector<1x1xf32>
    %394 = arith.cmpf ogt, %217, %393 : vector<1x1xf32>
    %395 = arith.mulf %392, %220 : vector<1x1xf32>
    %cst_123 = arith.constant 0.000000e+00 : f32
    %396 = vector.broadcast %cst_123 : f32 to vector<1x1xf32>
    %397 = arith.select %394, %395, %396 : vector<1x1xi1>, vector<1x1xf32>
    %cst_124 = arith.constant 1.000000e+00 : f32
    %398 = vector.broadcast %cst_124 : f32 to vector<1x1xf32>
    %399 = arith.mulf %398, %230 : vector<1x1xf32>
    %cst_125 = arith.constant 1.000000e+00 : f32
    %400 = vector.broadcast %cst_125 : f32 to vector<1x1xf32>
    %401 = arith.mulf %400, %379 : vector<1x1xf32>
    %cst_126 = arith.constant 1.000000e-03 : f32
    %402 = vector.broadcast %cst_126 : f32 to vector<1x1xf32>
    %403 = arith.mulf %402, %397 : vector<1x1xf32>
    %404 = arith.addf %399, %401 : vector<1x1xf32>
    %405 = arith.addf %404, %403 : vector<1x1xf32>
    %cst_127 = arith.constant 1.000000e+00 : f32
    %406 = vector.broadcast %cst_127 : f32 to vector<1x1xf32>
    %407 = arith.mulf %406, %405 : vector<1x1xf32>
    %408 = arith.addf %2, %407 : vector<1x1xf32>
    %409 = arith.addf %3, %399 : vector<1x1xf32>
    %410 = arith.addf %4, %401 : vector<1x1xf32>
    %411 = arith.addf %5, %403 : vector<1x1xf32>
    %412 = tpu.iota {dimensions = array<i32: 1>} : vector<1x128xi32>
    %c0_i32_128 = arith.constant 0 : i32
    %413 = vector.broadcast %c0_i32_128 : i32 to vector<1x128xi32>
    %414 = arith.cmpi eq, %412, %413 : vector<1x128xi32>
    %cst_129 = arith.constant 0.000000e+00 : f32
    %415 = vector.shape_cast %408 : vector<1x1xf32> to vector<1x1xf32>
    %416 = vector.broadcast %415 : vector<1x1xf32> to vector<1x128xf32>
    %417 = vector.broadcast %cst_129 : f32 to vector<1x128xf32>
    %418 = arith.select %414, %416, %417 : vector<1x128xi1>, vector<1x128xf32>
    %c1_i32_130 = arith.constant 1 : i32
    %419 = vector.broadcast %c1_i32_130 : i32 to vector<1x128xi32>
    %420 = arith.cmpi eq, %412, %419 : vector<1x128xi32>
    %cst_131 = arith.constant 0.000000e+00 : f32
    %421 = vector.shape_cast %409 : vector<1x1xf32> to vector<1x1xf32>
    %422 = vector.broadcast %421 : vector<1x1xf32> to vector<1x128xf32>
    %423 = vector.broadcast %cst_131 : f32 to vector<1x128xf32>
    %424 = arith.select %420, %422, %423 : vector<1x128xi1>, vector<1x128xf32>
    %425 = arith.addf %418, %424 : vector<1x128xf32>
    %c2_i32_132 = arith.constant 2 : i32
    %426 = vector.broadcast %c2_i32_132 : i32 to vector<1x128xi32>
    %427 = arith.cmpi eq, %412, %426 : vector<1x128xi32>
    %cst_133 = arith.constant 0.000000e+00 : f32
    %428 = vector.shape_cast %410 : vector<1x1xf32> to vector<1x1xf32>
    %429 = vector.broadcast %428 : vector<1x1xf32> to vector<1x128xf32>
    %430 = vector.broadcast %cst_133 : f32 to vector<1x128xf32>
    %431 = arith.select %427, %429, %430 : vector<1x128xi1>, vector<1x128xf32>
    %432 = arith.addf %425, %431 : vector<1x128xf32>
    %c3_i32_134 = arith.constant 3 : i32
    %433 = vector.broadcast %c3_i32_134 : i32 to vector<1x128xi32>
    %434 = arith.cmpi eq, %412, %433 : vector<1x128xi32>
    %cst_135 = arith.constant 0.000000e+00 : f32
    %435 = vector.shape_cast %411 : vector<1x1xf32> to vector<1x1xf32>
    %436 = vector.broadcast %435 : vector<1x1xf32> to vector<1x128xf32>
    %437 = vector.broadcast %cst_135 : f32 to vector<1x128xf32>
    %438 = arith.select %434, %436, %437 : vector<1x128xi1>, vector<1x128xf32>
    %439 = arith.addf %432, %438 : vector<1x128xf32>
    %440 = vector.shape_cast %439 : vector<1x128xf32> to vector<1x128xf32>
    %441 = vector.broadcast %440 : vector<1x128xf32> to vector<8x128xf32>
    %c0_136 = arith.constant 0 : index
    %c0_137 = arith.constant 0 : index
    %c0_138 = arith.constant 0 : index
    %442 = vector.load %arg4[%c0_136, %c0_137, %c0_138] : memref<1x8x128xf32, #tpu.memory_space<vmem>>, vector<1x8x128xf32>
    %443 = vector.shape_cast %442 : vector<1x8x128xf32> to vector<8x128xf32>
    %444 = vector.shape_cast %441 : vector<8x128xf32> to vector<1x8x128xf32>
    tpu.vector_store %arg4[%c0_136, %c0_137, %c0_138], %444 {strides = array<i32>} : memref<1x8x128xf32, #tpu.memory_space<vmem>>, vector<1x8x128xf32>,
    return
  }
  func.func @transform_0(%arg0: i32) -> (i32, i32, i32) {
    %c0_i32 = arith.constant 0 : i32
    %c0_i32_0 = arith.constant 0 : i32
    %c0_i32_1 = arith.constant 0 : i32
    return %arg0, %c0_i32, %c0_i32_0 : i32, i32, i32
  }
  func.func @transform_1(%arg0: i32) -> (i32, i32, i32) {
    %c0_i32 = arith.constant 0 : i32
    %c0_i32_0 = arith.constant 0 : i32
    %c0_i32_1 = arith.constant 0 : i32
    return %arg0, %c0_i32, %c0_i32_0 : i32, i32, i32
  }
  func.func @transform_2(%arg0: i32) -> (i32, i32, i32) {
    %c0_i32 = arith.constant 0 : i32
    %c0_i32_0 = arith.constant 0 : i32
    %c0_i32_1 = arith.constant 0 : i32
    return %arg0, %c0_i32, %c0_i32_0 : i32, i32, i32
  }
  func.func @transform_3(%arg0: i32) -> (i32, i32, i32) {
    %c0_i32 = arith.constant 0 : i32
    %c0_i32_0 = arith.constant 0 : i32
    %c0_i32_1 = arith.constant 0 : i32
    return %arg0, %c0_i32, %c0_i32_0 : i32, i32, i32
  }
}

</mosaic_0001>

<llo_original>
// kernel: tpu_custom_call.1
$region0: #{tpu_custom_call.1}
  #allocation0 [shape = 'u32[]', space=smem, size = 0x4, offset = 0x4, fixed_abs, tag = 'smem constant byte address 0x4 - core index']
  #allocation1 [shape = 'u32[144,128]{1,0:T(1,128)}', space=vmem, size = 0x12000, scoped, tag = 'internal scratch']
  %s0 = inlined_call_operand.hbm [shape: f32[2,4,256], index: 0, kind: input, shape index: {}]
  %s1 = inlined_call_operand.hbm [shape: s32[2,1,256], index: 1, kind: input, shape index: {}]
  %s2 = inlined_call_operand.hbm [shape: s32[2,1,256], index: 2, kind: input, shape index: {}]
  %s3 = inlined_call_operand.hbm [shape: f32[2,8,128], index: 3, kind: output, shape index: {}]
  %s4 = sld [smem:[#allocation0]]
  $region57: #{tpu_custom_call.1} parent=0
    _
  %s6 = ssub.s32 1, %s4
  %s7 = scalar_select 0, %s6, %s4
  $region1: #{tpu_custom_call.1} parent=0
    #allocation2 [shape = 'u8[8192]{0}', space=vmem, size = 0x2000, scoped, tag = 'input window, operand 0']
    #allocation3 [shape = 's32[2]{0}', space=sflag, size = 0x8, scoped, tag = 'scoped memory for tpu_custom_call.1']
    #allocation4 [shape = 's32[2]{0}', space=sflag, size = 0x8, scoped, tag = 'scoped memory for tpu_custom_call.1']
    #allocation5 [shape = 'u8[2048]{0}', space=vmem, size = 0x800, scoped, tag = 'input window, operand 1']
    #allocation6 [shape = 's32[2]{0}', space=sflag, size = 0x8, scoped, tag = 'scoped memory for tpu_custom_call.1']
    #allocation7 [shape = 'u8[2048]{0}', space=vmem, size = 0x800, scoped, tag = 'input window, operand 2']
    #allocation8 [shape = 'u8[8192]{0}', space=vmem, size = 0x2000, scoped, tag = 'output window, operand 0']
    %8 = vsyncpa [#allocation3], 0
    %s9 = scalar_lea.sflag [#allocation3], 1
    %10 = vsyncpa %s9, 0
    %11 = vsyncpa [#allocation6], 0
    %s12 = scalar_lea.sflag [#allocation6], 1
    %13 = vsyncpa %s12, 0
    %14 = vsyncpa [#allocation4], 0
    %s15 = scalar_lea.sflag [#allocation4], 1
    %16 = vsyncpa %s15, 0
    loop: start=0, step=1, limit=4
    $region2: #{tpu_custom_call.1} parent=1 // loop_pre_header
      _
    $region3: #{tpu_custom_call.1} parent=1 // loop_header
      %s18 = sphi 0, %s22
      %p19 = scmp.ge.s32.totalorder %s18, 4
      %s28 = sphi 0, %s30
      %s31 = sphi 0, %s28
      %s32 = sphi 0, %s31
      %s48 = sphi 0, %s32
      %s54 = sphi 0, %s56
      %s57 = sphi 0, %s54
      %s58 = sphi 0, %s57
      %s74 = sphi 0, %s58
      %s80 = sphi 0, %s82
      %s83 = sphi 0, %s80
      %s84 = sphi 0, %s83
      %s100 = sphi 0, %s84
      %s106 = sphi 0, %s108
      %s109 = sphi 0, %s106
      %s110 = sphi 0, %s109
      %s126 = sphi 0, %s110
    $region4: #{tpu_custom_call.1} parent=1 // loop_header_branch
      %21 = sbr.rel (%p19) target = $region8
    $region5: #{tpu_custom_call.1} parent=1 // loop_body
      %s23 = ssub.s32 %s18, 1
      %s24 = ssub.s32 %s18, 2
      %s25 = sadd.s32 %s18, 1
      %s26 = ssub.s32 %s18, %s25
      %p27 = scmp.eq.s32.totalorder %s26, 0
      %s29 = sadd.s32 %s28, 1
      %s30 = scalar_select %p27, %s28, %s29
      %p33 = pneg %p27
      %p34 = scmp.eq.s32.totalorder %s18, 1
      %p35 = por %p33, %p34
      %p36 = scmp.ne.s32.totalorder %s28, %s31
      %p37 = scmp.eq.s32.totalorder %s18, 0
      %p38 = por %p36, %p37
      %p39 = scmp.ne.s32.totalorder %s28, %s31
      %p40 = scmp.eq.s32.totalorder %s23, 1
      %p41 = por %p39, %p40
      %p42 = scmp.ne.s32.totalorder %s31, %s32
      %p43 = scmp.eq.s32.totalorder %s23, 0
      %p44 = por %p42, %p43
      %p45 = scmp.ne.s32.totalorder %s31, %s32
      %p46 = scmp.eq.s32.totalorder %s24, 1
      %p47 = por %p45, %p46
      %p49 = scmp.ne.s32.totalorder %s32, %s48
      %p50 = scmp.eq.s32.totalorder %s24, 0
      %p51 = por %p49, %p50
      %s52 = ssub.s32 %s18, %s25
      %p53 = scmp.eq.s32.totalorder %s52, 0
      %s55 = sadd.s32 %s54, 1
      %s56 = scalar_select %p53, %s54, %s55
      %p59 = pneg %p53
      %p60 = scmp.eq.s32.totalorder %s18, 1
      %p61 = por %p59, %p60
      %p62 = scmp.ne.s32.totalorder %s54, %s57
      %p63 = scmp.eq.s32.totalorder %s18, 0
      %p64 = por %p62, %p63
      %p65 = scmp.ne.s32.totalorder %s54, %s57
      %p66 = scmp.eq.s32.totalorder %s23, 1
      %p67 = por %p65, %p66
      %p68 = scmp.ne.s32.totalorder %s57, %s58
      %p69 = scmp.eq.s32.totalorder %s23, 0
      %p70 = por %p68, %p69
      %p71 = scmp.ne.s32.totalorder %s57, %s58
      %p72 = scmp.eq.s32.totalorder %s24, 1
      %p73 = por %p71, %p72
      %p75 = scmp.ne.s32.totalorder %s58, %s74
      %p76 = scmp.eq.s32.totalorder %s24, 0
      %p77 = por %p75, %p76
      %s78 = ssub.s32 %s18, %s25
      %p79 = scmp.eq.s32.totalorder %s78, 0
      %s81 = sadd.s32 %s80, 1
      %s82 = scalar_select %p79, %s80, %s81
      %p85 = pneg %p79
      %p86 = scmp.eq.s32.totalorder %s18, 1
      %p87 = por %p85, %p86
      %p88 = scmp.ne.s32.totalorder %s80, %s83
      %p89 = scmp.eq.s32.totalorder %s18, 0
      %p90 = por %p88, %p89
      %p91 = scmp.ne.s32.totalorder %s80, %s83
      %p92 = scmp.eq.s32.totalorder %s23, 1
      %p93 = por %p91, %p92
      %p94 = scmp.ne.s32.totalorder %s83, %s84
      %p95 = scmp.eq.s32.totalorder %s23, 0
      %p96 = por %p94, %p95
      %p97 = scmp.ne.s32.totalorder %s83, %s84
      %p98 = scmp.eq.s32.totalorder %s24, 1
      %p99 = por %p97, %p98
      %p101 = scmp.ne.s32.totalorder %s84, %s100
      %p102 = scmp.eq.s32.totalorder %s24, 0
      %p103 = por %p101, %p102
      %s104 = ssub.s32 %s18, %s25
      %p105 = scmp.eq.s32.totalorder %s104, 0
      %s107 = sadd.s32 %s106, 1
      %s108 = scalar_select %p105, %s106, %s107
      %p111 = pneg %p105
      %p112 = scmp.eq.s32.totalorder %s18, 1
      %p113 = por %p111, %p112
      %p114 = scmp.ne.s32.totalorder %s106, %s109
      %p115 = scmp.eq.s32.totalorder %s18, 0
      %p116 = por %p114, %p115
      %p117 = scmp.ne.s32.totalorder %s106, %s109
      %p118 = scmp.eq.s32.totalorder %s23, 1
      %p119 = por %p117, %p118
      %p120 = scmp.ne.s32.totalorder %s109, %s110
      %p121 = scmp.eq.s32.totalorder %s23, 0
      %p122 = por %p120, %p121
      %p123 = scmp.ne.s32.totalorder %s109, %s110
      %p124 = scmp.eq.s32.totalorder %s24, 1
      %p125 = por %p123, %p124
      %p127 = scmp.ne.s32.totalorder %s110, %s126
      %p128 = scmp.eq.s32.totalorder %s24, 0
      %p129 = por %p127, %p128
      %p130 = scmp.le.s32.totalorder 1, %s18
      %p131 = scmp.lt.s32.totalorder %s18, 3
      %p132 = pnand %p130, %p131
      %p133 = pneg %p132
      // Predicated region
      $region9: #{tpu_custom_call.1} parent=5 // pred_check
        _
      $region10: #{tpu_custom_call.1} parent=5 // pred_check_branch
        %135 = sbr.rel (%p132) target = $region12
      $region11: #{tpu_custom_call.1} parent=5 // pred_region
        %s136 = ssub.s32 %s18, 1
      $region12: #{tpu_custom_call.1} parent=5 // pred_fallthru
        _
      %p137 = scmp.lt.s32.totalorder %s18, 2
      // Predicated region
      $region13: #{tpu_custom_call.1} parent=5 // pred_check
        %p138 = pneg %p137
      $region14: #{tpu_custom_call.1} parent=5 // pred_check_branch
        %140 = sbr.rel (%p138) target = $region16
      $region15: #{tpu_custom_call.1} parent=5 // pred_region
        // Predicated region
        $region17: #{tpu_custom_call.1} parent=15 // pred_check
          %p141 = pneg %p38
        $region18: #{tpu_custom_call.1} parent=15 // pred_check_branch
          %143 = sbr.rel (%p141) target = $region20
        $region19: #{tpu_custom_call.1} parent=15 // pred_region
          %s144 = sand.u32 %s28, 1
          %s145 = scalar_lea.sflag [#allocation3], %s144
          %s146 = sand.u32 %s28, 1
          %s147 = smul.addr %s146, 8
          %s148 = scalar_lea.vmem [#allocation2], %s147
          %s150 = ssub.s32 128, 128
          %151 = vsyncadd %s145, %s150
          %s152 = smul.addr %s18, 2
          %s153 = smul.addr %s152, 64
          %s154 = scalar_lea.hbm %s0, %s153
          %s156 = sshll.u32 %s148, 4
          %s157 = int_to_ptr.vmem [resolvable:$true] %s156
          %159 = dma.hbm_to_vmem [thread:$0]  %s154, 128, %s157, %s145
        $region20: #{tpu_custom_call.1} parent=15 // pred_fallthru
          _
        // Predicated region
        $region21: #{tpu_custom_call.1} parent=15 // pred_check
          %p160 = pneg %p64
        $region22: #{tpu_custom_call.1} parent=15 // pred_check_branch
          %162 = sbr.rel (%p160) target = $region24
        $region23: #{tpu_custom_call.1} parent=15 // pred_region
          %s163 = sand.u32 %s18, 1
          %s164 = scalar_lea.sflag [#allocation6], %s163
          %s165 = sand.u32 %s54, 1
          %s166 = smul.addr %s165, 2
          %s167 = scalar_lea.vmem [#allocation5], %s166
          %s169 = ssub.s32 32, 32
          %170 = vsyncadd %s164, %s169
          %s171 = smul.addr %s18, 2
          %s172 = smul.addr %s171, 16
          %s173 = scalar_lea.hbm %s1, %s172
          %s175 = sshll.u32 %s167, 4
          %s176 = int_to_ptr.vmem [resolvable:$true] %s175
          %178 = dma.hbm_to_vmem [thread:$0]  %s173, 32, %s176, %s164
        $region24: #{tpu_custom_call.1} parent=15 // pred_fallthru
          _
        // Predicated region
        $region25: #{tpu_custom_call.1} parent=15 // pred_check
          %p179 = pneg %p90
        $region26: #{tpu_custom_call.1} parent=15 // pred_check_branch
          %181 = sbr.rel (%p179) target = $region28
        $region27: #{tpu_custom_call.1} parent=15 // pred_region
          %s182 = sand.u32 %s18, 1
          %s183 = scalar_lea.sflag [#allocation6], %s182
          %s184 = sand.u32 %s80, 1
          %s185 = smul.addr %s184, 2
          %s186 = scalar_lea.vmem [#allocation7], %s185
          %s188 = ssub.s32 32, 32
          %189 = vsyncadd %s183, %s188
          %s190 = smul.addr %s18, 2
          %s191 = smul.addr %s190, 16
          %s192 = scalar_lea.hbm %s2, %s191
          %s194 = sshll.u32 %s186, 4
          %s195 = int_to_ptr.vmem [resolvable:$true] %s194
          %197 = dma.hbm_to_vmem [thread:$0]  %s192, 32, %s195, %s183
        $region28: #{tpu_custom_call.1} parent=15 // pred_fallthru
          _
      $region16: #{tpu_custom_call.1} parent=5 // pred_fallthru
        _
      %p198 = scmp.le.s32.totalorder 1, %s18
      %p199 = scmp.lt.s32.totalorder %s18, 3
      %p200 = pnand %p198, %p199
      %p201 = pneg %p200
      // Predicated region
      $region29: #{tpu_custom_call.1} parent=5 // pred_check
        _
      $region30: #{tpu_custom_call.1} parent=5 // pred_check_branch
        %203 = sbr.rel (%p200) target = $region32
      $region31: #{tpu_custom_call.1} parent=5 // pred_region
        %s204 = ssub.s32 %s18, 1
        %s205 = sand.u32 %s31, 1
        %s206 = scalar_lea.sflag [#allocation3], %s205
        %s207 = sand.u32 %s31, 1
        %s208 = smul.addr %s207, 8
        %s209 = scalar_lea.vmem [#allocation2], %s208
        // Predicated region
        $region33: #{tpu_custom_call.1} parent=31 // pred_check
          %p210 = pneg %p44
        $region34: #{tpu_custom_call.1} parent=31 // pred_check_branch
          %212 = sbr.rel (%p210) target = $region36
        $region35: #{tpu_custom_call.1} parent=31 // pred_region
          %213 = dma.done %s206, 128
        $region36: #{tpu_custom_call.1} parent=31 // pred_fallthru
          _
        %s214 = sand.u32 %s23, 1
        %s215 = scalar_lea.sflag [#allocation6], %s214
        %s216 = sand.u32 %s57, 1
        %s217 = smul.addr %s216, 2
        %s218 = scalar_lea.vmem [#allocation5], %s217
        // Predicated region
        $region37: #{tpu_custom_call.1} parent=31 // pred_check
          %p219 = pneg %p70
        $region38: #{tpu_custom_call.1} parent=31 // pred_check_branch
          %221 = sbr.rel (%p219) target = $region40
        $region39: #{tpu_custom_call.1} parent=31 // pred_region
          %222 = dma.done %s215, 32
        $region40: #{tpu_custom_call.1} parent=31 // pred_fallthru
          _
        %s223 = sand.u32 %s23, 1
        %s224 = scalar_lea.sflag [#allocation6], %s223
        %s225 = sand.u32 %s83, 1
        %s226 = smul.addr %s225, 2
        %s227 = scalar_lea.vmem [#allocation7], %s226
        // Predicated region
        $region41: #{tpu_custom_call.1} parent=31 // pred_check
          %p228 = pneg %p96
        $region42: #{tpu_custom_call.1} parent=31 // pred_check_branch
          %230 = sbr.rel (%p228) target = $region44
        $region43: #{tpu_custom_call.1} parent=31 // pred_region
          %231 = dma.done %s224, 32
        $region44: #{tpu_custom_call.1} parent=31 // pred_fallthru
          _
        %s232 = sand.u32 %s31, 1
        %s233 = scalar_lea.sflag [#allocation3], %s232
        %s234 = sand.u32 %s31, 1
        %s235 = smul.addr %s234, 8
        %s236 = scalar_lea.vmem [#allocation2], %s235
        %p237 = pneg %p44
        %p238 = pneg %p41
        %s239 = sand.u32 %s23, 1
        %s240 = scalar_lea.sflag [#allocation6], %s239
        %s241 = sand.u32 %s57, 1
        %s242 = smul.addr %s241, 2
        %s243 = scalar_lea.vmem [#allocation5], %s242
        %p244 = pneg %p70
        %p245 = pneg %p67
        %s246 = sand.u32 %s23, 1
        %s247 = scalar_lea.sflag [#allocation6], %s246
        %s248 = sand.u32 %s83, 1
        %s249 = smul.addr %s248, 2
        %s250 = scalar_lea.vmem [#allocation7], %s249
        %p251 = pneg %p96
        %p252 = pneg %p93
        %p253 = pneg %p122
        %p254 = pneg %p119
        %s255 = sand.u32 %s109, 1
        %s256 = scalar_lea.sflag [#allocation4], %s255
        %s257 = sand.u32 %s109, 1
        %s258 = smul.addr %s257, 8
        %s259 = scalar_lea.vmem [#allocation8], %s258
        %v260 = vlaneseq
        %v261 = vshrl.u32 %v260, 7
        %v262 = vlaneseq
        %v263 = vand.u32 %v262, 127
        %v264 = vld [vmem:[%s218] sm:$0x3]
        %v265 = vld [vmem:[%s227] sm:$0x3]
        %vm266 = vcmp.ne.s32.totalorder %v264, 4294967196
        %vm267 = vcmp.eq.s32.totalorder %v264, 1
        %v268 = vsel %vm267, 0, %v265
        %v269 = vcvt.s32.f32 %v268
        %v270 = vsel %vm266, %v269, 3e+38
        %v272 = vlaneseq
        %v273 = vshrl.u32 %v272, 7
        %v274 = vsub.s32 0, %v273
        %v275 = vrot.slane %v270, %v274
        %v276 = vlaneseq
        %v277 = vshrl.u32 %v276, 7
        %v278 = vsub.s32 1, %v277
        %v279 = vrot.slane %v270, %v278
        %vm282 = vcmask 1040384
        %v283 = vsel %vm282, %v275, inf
        %v284 = vsel %vm282, %v279, inf
        %v285 = vmin.f32 %v283, %v284
        %286 = vmin.xlane.f32.xlu0 %v285
        %v287 = vpop.xlane.xlu0 %286
        %v289 = vlaneseq
        %v290 = vshrl.u32 %v289, 7
        %v291 = vsub.s32 0, %v290
        %v292 = vrot.slane %v287, %v291
        %vm294 = vcmp.eq.f32.partialorder %v270, %v292
        %vm295 = vcmp.lt.f32.partialorder %v287, 3e+38
        %v296 = vsel %vm295, 1, 0
        %vm297 = vcmp.eq.s32.totalorder %v296, 1
        %v298 = vsel %vm297, 1, 0
        %v299 = vlaneseq
        %v300 = vshrl.u32 %v299, 7
        %v301 = vsub.s32 0, %v300
        %v302 = vrot.slane %v298, %v301
        %vm303 = vcmp.ne.s32.totalorder %v302, 0
        %vm304 = vmand %vm294, %vm303
        %v305 = vsel %vm304, 0, 8
        %v306 = vsel %vm294, 3e+38, %v270
        %v308 = vlaneseq
        %v309 = vshrl.u32 %v308, 7
        %v310 = vsub.s32 0, %v309
        %v311 = vrot.slane %v306, %v310
        %v312 = vlaneseq
        %v313 = vshrl.u32 %v312, 7
        %v314 = vsub.s32 1, %v313
        %v315 = vrot.slane %v306, %v314
        %v318 = vsel %vm282, %v311, inf
        %v319 = vsel %vm282, %v315, inf
        %v320 = vmin.f32 %v318, %v319
        %321 = vmin.xlane.f32.xlu0 %v320
        %v322 = vpop.xlane.xlu0 %321
        %v324 = vlaneseq
        %v325 = vshrl.u32 %v324, 7
        %v326 = vsub.s32 0, %v325
        %v327 = vrot.slane %v322, %v326
        %vm329 = vcmp.eq.f32.partialorder %v270, %v327
        %vm330 = vcmp.lt.f32.partialorder %v322, 3e+38
        %v331 = vsel %vm330, 1, 0
        %vm332 = vcmp.eq.s32.totalorder %v331, 1
        %v333 = vsel %vm332, 1, 0
        %v334 = vlaneseq
        %v335 = vshrl.u32 %v334, 7
        %v336 = vsub.s32 0, %v335
        %v337 = vrot.slane %v333, %v336
        %vm338 = vcmp.ne.s32.totalorder %v337, 0
        %vm339 = vmand %vm329, %vm338
        %v340 = vsel %vm339, 1, %v305
        %vm341 = vcmp.eq.f32.partialorder %v306, %v327
        %v342 = vsel %vm341, 3e+38, %v306
        %v344 = vlaneseq
        %v345 = vshrl.u32 %v344, 7
        %v346 = vsub.s32 0, %v345
        %v347 = vrot.slane %v342, %v346
        %v348 = vlaneseq
        %v349 = vshrl.u32 %v348, 7
        %v350 = vsub.s32 1, %v349
        %v351 = vrot.slane %v342, %v350
        %v354 = vsel %vm282, %v347, inf
        %v355 = vsel %vm282, %v351, inf
        %v356 = vmin.f32 %v354, %v355
        %357 = vmin.xlane.f32.xlu0 %v356
        %v358 = vpop.xlane.xlu0 %357
        %v360 = vlaneseq
        %v361 = vshrl.u32 %v360, 7
        %v362 = vsub.s32 0, %v361
        %v363 = vrot.slane %v358, %v362
        %vm365 = vcmp.eq.f32.partialorder %v270, %v363
        %vm366 = vcmp.lt.f32.partialorder %v358, 3e+38
        %v367 = vsel %vm366, 1, 0
        %vm368 = vcmp.eq.s32.totalorder %v367, 1
        %v369 = vsel %vm368, 1, 0
        %v370 = vlaneseq
        %v371 = vshrl.u32 %v370, 7
        %v372 = vsub.s32 0, %v371
        %v373 = vrot.slane %v369, %v372
        %vm374 = vcmp.ne.s32.totalorder %v373, 0
        %vm375 = vmand %vm365, %vm374
        %v376 = vsel %vm375, 2, %v340
        %vm377 = vcmp.eq.f32.partialorder %v342, %v363
        %v378 = vsel %vm377, 3e+38, %v342
        %v380 = vlaneseq
        %v381 = vshrl.u32 %v380, 7
        %v382 = vsub.s32 0, %v381
        %v383 = vrot.slane %v378, %v382
        %v384 = vlaneseq
        %v385 = vshrl.u32 %v384, 7
        %v386 = vsub.s32 1, %v385
        %v387 = vrot.slane %v378, %v386
        %v390 = vsel %vm282, %v383, inf
        %v391 = vsel %vm282, %v387, inf
        %v392 = vmin.f32 %v390, %v391
        %393 = vmin.xlane.f32.xlu0 %v392
        %v394 = vpop.xlane.xlu0 %393
        %v396 = vlaneseq
        %v397 = vshrl.u32 %v396, 7
        %v398 = vsub.s32 0, %v397
        %v399 = vrot.slane %v394, %v398
        %vm401 = vcmp.eq.f32.partialorder %v270, %v399
        %vm402 = vcmp.lt.f32.partialorder %v394, 3e+38
        %v403 = vsel %vm402, 1, 0
        %vm404 = vcmp.eq.s32.totalorder %v403, 1
        %v405 = vsel %vm404, 1, 0
        %v406 = vlaneseq
        %v407 = vshrl.u32 %v406, 7
        %v408 = vsub.s32 0, %v407
        %v409 = vrot.slane %v405, %v408
        %vm410 = vcmp.ne.s32.totalorder %v409, 0
        %vm411 = vmand %vm401, %vm410
        %v412 = vsel %vm411, 3, %v376
        %vm413 = vcmp.eq.f32.partialorder %v378, %v399
        %v414 = vsel %vm413, 3e+38, %v378
        %v416 = vlaneseq
        %v417 = vshrl.u32 %v416, 7
        %v418 = vsub.s32 0, %v417
        %v419 = vrot.slane %v414, %v418
        %v420 = vlaneseq
        %v421 = vshrl.u32 %v420, 7
        %v422 = vsub.s32 1, %v421
        %v423 = vrot.slane %v414, %v422
        %v426 = vsel %vm282, %v419, inf
        %v427 = vsel %vm282, %v423, inf
        %v428 = vmin.f32 %v426, %v427
        %429 = vmin.xlane.f32.xlu0 %v428
        %v430 = vpop.xlane.xlu0 %429
        %v432 = vlaneseq
        %v433 = vshrl.u32 %v432, 7
        %v434 = vsub.s32 0, %v433
        %v435 = vrot.slane %v430, %v434
        %vm437 = vcmp.eq.f32.partialorder %v270, %v435
        %vm438 = vcmp.lt.f32.partialorder %v430, 3e+38
        %v439 = vsel %vm438, 1, 0
        %vm440 = vcmp.eq.s32.totalorder %v439, 1
        %v441 = vsel %vm440, 1, 0
        %v442 = vlaneseq
        %v443 = vshrl.u32 %v442, 7
        %v444 = vsub.s32 0, %v443
        %v445 = vrot.slane %v441, %v444
        %vm446 = vcmp.ne.s32.totalorder %v445, 0
        %vm447 = vmand %vm437, %vm446
        %v448 = vsel %vm447, 4, %v412
        %vm449 = vcmp.eq.f32.partialorder %v414, %v435
        %v450 = vsel %vm449, 3e+38, %v414
        %v452 = vlaneseq
        %v453 = vshrl.u32 %v452, 7
        %v454 = vsub.s32 0, %v453
        %v455 = vrot.slane %v450, %v454
        %v456 = vlaneseq
        %v457 = vshrl.u32 %v456, 7
        %v458 = vsub.s32 1, %v457
        %v459 = vrot.slane %v450, %v458
        %v462 = vsel %vm282, %v455, inf
        %v463 = vsel %vm282, %v459, inf
        %v464 = vmin.f32 %v462, %v463
        %465 = vmin.xlane.f32.xlu0 %v464
        %v466 = vpop.xlane.xlu0 %465
        %v468 = vlaneseq
        %v469 = vshrl.u32 %v468, 7
        %v470 = vsub.s32 0, %v469
        %v471 = vrot.slane %v466, %v470
        %vm473 = vcmp.eq.f32.partialorder %v270, %v471
        %vm474 = vcmp.lt.f32.partialorder %v466, 3e+38
        %v475 = vsel %vm474, 1, 0
        %vm476 = vcmp.eq.s32.totalorder %v475, 1
        %v477 = vsel %vm476, 1, 0
        %v478 = vlaneseq
        %v479 = vshrl.u32 %v478, 7
        %v480 = vsub.s32 0, %v479
        %v481 = vrot.slane %v477, %v480
        %vm482 = vcmp.ne.s32.totalorder %v481, 0
        %vm483 = vmand %vm473, %vm482
        %v484 = vsel %vm483, 5, %v448
        %vm485 = vcmp.eq.f32.partialorder %v450, %v471
        %v486 = vsel %vm485, 3e+38, %v450
        %v488 = vlaneseq
        %v489 = vshrl.u32 %v488, 7
        %v490 = vsub.s32 0, %v489
        %v491 = vrot.slane %v486, %v490
        %v492 = vlaneseq
        %v493 = vshrl.u32 %v492, 7
        %v494 = vsub.s32 1, %v493
        %v495 = vrot.slane %v486, %v494
        %v498 = vsel %vm282, %v491, inf
        %v499 = vsel %vm282, %v495, inf
        %v500 = vmin.f32 %v498, %v499
        %501 = vmin.xlane.f32.xlu0 %v500
        %v502 = vpop.xlane.xlu0 %501
        %v504 = vlaneseq
        %v505 = vshrl.u32 %v504, 7
        %v506 = vsub.s32 0, %v505
        %v507 = vrot.slane %v502, %v506
        %vm509 = vcmp.eq.f32.partialorder %v270, %v507
        %vm510 = vcmp.lt.f32.partialorder %v502, 3e+38
        %v511 = vsel %vm510, 1, 0
        %vm512 = vcmp.eq.s32.totalorder %v511, 1
        %v513 = vsel %vm512, 1, 0
        %v514 = vlaneseq
        %v515 = vshrl.u32 %v514, 7
        %v516 = vsub.s32 0, %v515
        %v517 = vrot.slane %v513, %v516
        %vm518 = vcmp.ne.s32.totalorder %v517, 0
        %vm519 = vmand %vm509, %vm518
        %v520 = vsel %vm519, 6, %v484
        %vm521 = vcmp.eq.f32.partialorder %v486, %v507
        %v522 = vsel %vm521, 3e+38, %v486
        %v524 = vlaneseq
        %v525 = vshrl.u32 %v524, 7
        %v526 = vsub.s32 0, %v525
        %v527 = vrot.slane %v522, %v526
        %v528 = vlaneseq
        %v529 = vshrl.u32 %v528, 7
        %v530 = vsub.s32 1, %v529
        %v531 = vrot.slane %v522, %v530
        %v534 = vsel %vm282, %v527, inf
        %v535 = vsel %vm282, %v531, inf
        %v536 = vmin.f32 %v534, %v535
        %537 = vmin.xlane.f32.xlu0 %v536
        %v538 = vpop.xlane.xlu0 %537
        %v540 = vlaneseq
        %v541 = vshrl.u32 %v540, 7
        %v542 = vsub.s32 0, %v541
        %v543 = vrot.slane %v538, %v542
        %vm545 = vcmp.eq.f32.partialorder %v270, %v543
        %vm546 = vcmp.lt.f32.partialorder %v538, 3e+38
        %v547 = vsel %vm546, 1, 0
        %vm548 = vcmp.eq.s32.totalorder %v547, 1
        %v549 = vsel %vm548, 1, 0
        %v550 = vlaneseq
        %v551 = vshrl.u32 %v550, 7
        %v552 = vsub.s32 0, %v551
        %v553 = vrot.slane %v549, %v552
        %vm554 = vcmp.ne.s32.totalorder %v553, 0
        %vm555 = vmand %vm545, %vm554
        %v556 = vsel %vm555, 7, %v520
        %vm557 = vcmp.eq.f32.partialorder %v522, %v543
        %v558 = vsel %vm557, 3e+38, %v522
        %vm559 = vcmp.lt.f32.partialorder %v558, 3e+38
        %v560 = vsel %vm559, 7, %v556
        %v561 = vlaneseq
        %v562 = vshrl.u32 %v561, 7
        %v563 = vsub.s32 0, %v562
        %v564 = vrot.slane %v560, %v563
        %v565 = vlaneseq
        %v566 = vshrl.u32 %v565, 7
        %v567 = vsub.s32 1, %v566
        %v568 = vrot.slane %v560, %v567
        %vm569 = vcmp.eq.s32.totalorder %v564, %v261
        %vm570 = vcmp.eq.s32.totalorder %v568, %v261
        %v571 = vsel %vm569, 1.0, 0.0
        %v572 = vsel %vm570, 1.0, 0.0
        %v573 = vadd.f32 %v571, %v572
        %574 = vadd.xlane.f32.xlu0 %v573
        %v575 = vpop.xlane.xlu0 %574
        %v576 = vadd.f32 %v575, 1e-08
        %v577 = vrcp.pop %v576
        %v578 = vld [vmem:[%s209] ss:$4 sm:$0x3]
        %v580 = vlaneseq
        %v581 = vshrl.u32 %v580, 7
        %v582 = vsub.s32 0, %v581
        %v583 = vrot.slane %v578, %v582
        %v584 = vlaneseq
        %v585 = vshrl.u32 %v584, 7
        %v586 = vsub.s32 1, %v585
        %v587 = vrot.slane %v578, %v586
        %v590 = vmul.f32 %v571, %v583
        %v591 = vmul.f32 %v572, %v587
        %v592 = vadd.f32 %v590, %v591
        %593 = vadd.xlane.f32.xlu0 %v592
        %v594 = vpop.xlane.xlu0 %593
        %v595 = vmul.f32 %v594, %v577
        %v596 = vsub.f32 %v583, %v595
        %v597 = vsub.f32 %v587, %v595
        %v598 = vand.u32 2147483647, %v596
        %v599 = vand.u32 2147483647, %v597
        %s600 = scalar_lea.vmem %s209, 1 [#allocation2]
        %v601 = vld [vmem:[%s600] ss:$4 sm:$0x3]
        %v603 = vlaneseq
        %v604 = vshrl.u32 %v603, 7
        %v605 = vsub.s32 0, %v604
        %v606 = vrot.slane %v601, %v605
        %v607 = vlaneseq
        %v608 = vshrl.u32 %v607, 7
        %v609 = vsub.s32 1, %v608
        %v610 = vrot.slane %v601, %v609
        %v613 = vmul.f32 %v571, %v606
        %v614 = vmul.f32 %v572, %v610
        %v615 = vadd.f32 %v613, %v614
        %616 = vadd.xlane.f32.xlu0 %v615
        %v617 = vpop.xlane.xlu0 %616
        %v618 = vmul.f32 %v617, %v577
        %v619 = vsub.f32 %v606, %v618
        %v620 = vsub.f32 %v610, %v618
        %v621 = vand.u32 2147483647, %v619
        %v622 = vand.u32 2147483647, %v620
        %v623 = vadd.f32 %v598, %v621
        %v624 = vadd.f32 %v599, %v622
        %s625 = scalar_lea.vmem %s209, 2 [#allocation2]
        %v626 = vld [vmem:[%s625] ss:$4 sm:$0x3]
        %v628 = vlaneseq
        %v629 = vshrl.u32 %v628, 7
        %v630 = vsub.s32 0, %v629
        %v631 = vrot.slane %v626, %v630
        %v632 = vlaneseq
        %v633 = vshrl.u32 %v632, 7
        %v634 = vsub.s32 1, %v633
        %v635 = vrot.slane %v626, %v634
        %v638 = vmul.f32 %v571, %v631
        %v639 = vmul.f32 %v572, %v635
        %v640 = vadd.f32 %v638, %v639
        %641 = vadd.xlane.f32.xlu0 %v640
        %v642 = vpop.xlane.xlu0 %641
        %v643 = vmul.f32 %v642, %v577
        %v644 = vsub.f32 %v631, %v643
        %v645 = vsub.f32 %v635, %v643
        %v646 = vand.u32 2147483647, %v644
        %v647 = vand.u32 2147483647, %v645
        %v648 = vadd.f32 %v623, %v646
        %v649 = vadd.f32 %v624, %v647
        %s650 = scalar_lea.vmem %s209, 3 [#allocation2]
        %v651 = vld [vmem:[%s650] ss:$4 sm:$0x3]
        %v653 = vlaneseq
        %v654 = vshrl.u32 %v653, 7
        %v655 = vsub.s32 0, %v654
        %v656 = vrot.slane %v651, %v655
        %v657 = vlaneseq
        %v658 = vshrl.u32 %v657, 7
        %v659 = vsub.s32 1, %v658
        %v660 = vrot.slane %v651, %v659
        %v663 = vmul.f32 %v571, %v656
        %v664 = vmul.f32 %v572, %v660
        %v665 = vadd.f32 %v663, %v664
        %666 = vadd.xlane.f32.xlu0 %v665
        %v667 = vpop.xlane.xlu0 %666
        %v668 = vmul.f32 %v667, %v577
        %v669 = vsub.f32 %v656, %v668
        %v670 = vsub.f32 %v660, %v668
        %v671 = vand.u32 2147483647, %v669
        %v672 = vand.u32 2147483647, %v670
        %v673 = vadd.f32 %v648, %v671
        %v674 = vadd.f32 %v649, %v672
        %v675 = vsub.f32 %v673, 0.5
        %v676 = vsub.f32 %v674, 0.5
        %v677 = vmax.f32 %v675, 0.0
        %v678 = vmax.f32 %v676, 0.0
        %v679 = vmul.f32 %v677, %v677
        %v680 = vmul.f32 %v678, %v678
        %v681 = vmul.f32 %v679, %v571
        %v682 = vmul.f32 %v680, %v572
        %v683 = vadd.f32 %v681, %v682
        %684 = vadd.xlane.f32.xlu0 %v683
        %v685 = vpop.xlane.xlu0 %684
        %v686 = vmul.f32 %v685, %v577
        %vm687 = vcmp.gt.f32.partialorder %v575, 0.5
        %v688 = vsel %vm687, 1.0, 0.0
        %vm689 = vcmask 7168
        %v690 = vsel %vm689, %v688, 0.0
        %691 = vadd.xlane.f32.xlu0 %v690
        %v692 = vpop.xlane.xlu0 %691
        %v693 = vrot.slane %v692, 4
        %v694 = vadd.f32 %v692, %v693
        %v695 = vrot.slane %v694, 2
        %v696 = vadd.f32 %v694, %v695
        %v697 = vrot.slane %v696, 1
        %v698 = vadd.f32 %v696, %v697
        %s699 = vtos %v698
        %v700 = vstv %s699
        %v701 = vmax.f32 %v700, 1.0
        %v702 = vrcp.pop %v701
        %v703 = vsel %vm689, %v686, 0.0
        %704 = vadd.xlane.f32.xlu0 %v703
        %v705 = vpop.xlane.xlu0 %704
        %v706 = vrot.slane %v705, 4
        %v707 = vadd.f32 %v705, %v706
        %v708 = vrot.slane %v707, 2
        %v709 = vadd.f32 %v707, %v708
        %v710 = vrot.slane %v709, 1
        %v711 = vadd.f32 %v709, %v710
        %s712 = vtos %v711
        %v713 = vstv %s712
        %vm714 = vcmp.gt.f32.partialorder %v700, 0.5
        %v715 = vmul.f32 %v713, %v702
        %v716 = vsel %vm714, %v715, 0.0
        %vm717 = vcmp.eq.s32.totalorder %v263, 4
        %v718 = vsel %vm717, %v688, 0.0
        %vm719 = vcmp.eq.s32.totalorder %v263, 0
        %v720 = vsel %vm719, %v595, 0.0
        %v721 = vadd.f32 %v718, %v720
        %vm722 = vcmp.eq.s32.totalorder %v263, 1
        %v723 = vsel %vm722, %v618, 0.0
        %v724 = vadd.f32 %v721, %v723
        %vm725 = vcmp.eq.s32.totalorder %v263, 2
        %v726 = vsel %vm725, %v643, 0.0
        %v727 = vadd.f32 %v724, %v726
        %vm728 = vcmp.eq.s32.totalorder %v263, 3
        %v729 = vsel %vm728, %v668, 0.0
        %v730 = vadd.f32 %v727, %v729
        %v731 = vrot.slane %v730, 7
        %v732 = vsub.f32 %v730, %v731
        %v733 = vand.u32 2147483647, %v732
        %vm734 = vcmask 39936
        %v735 = vsel %vm734, %v733, 0.0
        %736 = vadd.xlane.f32.xlu0 %v735
        %v737 = vpop.xlane.xlu0 %736
        %v738 = vsub.f32 3.0, %v737
        %v739 = vmax.f32 %v738, 0.0
        %v740 = vmul.f32 %v739, %v739
        %v741 = vmul.f32 %v740, %v688
        %v742 = vmul.f32 %v741, %v731
        %v743 = vadd.f32 %v742, 0.0
        %v744 = vrot.slane %v730, 6
        %v745 = vsub.f32 %v730, %v744
        %v746 = vand.u32 2147483647, %v745
        %v747 = vsel %vm734, %v746, 0.0
        %748 = vadd.xlane.f32.xlu0 %v747
        %v749 = vpop.xlane.xlu0 %748
        %v750 = vsub.f32 3.0, %v749
        %v751 = vmax.f32 %v750, 0.0
        %v752 = vmul.f32 %v751, %v751
        %v753 = vmul.f32 %v752, %v688
        %v754 = vmul.f32 %v753, %v744
        %v755 = vadd.f32 %v743, %v754
        %v756 = vrot.slane %v730, 5
        %v757 = vsub.f32 %v730, %v756
        %v758 = vand.u32 2147483647, %v757
        %v759 = vsel %vm734, %v758, 0.0
        %760 = vadd.xlane.f32.xlu0 %v759
        %v761 = vpop.xlane.xlu0 %760
        %v762 = vsub.f32 3.0, %v761
        %v763 = vmax.f32 %v762, 0.0
        %v764 = vmul.f32 %v763, %v763
        %v765 = vmul.f32 %v764, %v688
        %v766 = vmul.f32 %v765, %v756
        %v767 = vadd.f32 %v755, %v766
        %v768 = vrot.slane %v730, 4
        %v769 = vsub.f32 %v730, %v768
        %v770 = vand.u32 2147483647, %v769
        %v771 = vsel %vm734, %v770, 0.0
        %772 = vadd.xlane.f32.xlu0 %v771
        %v773 = vpop.xlane.xlu0 %772
        %v774 = vsub.f32 3.0, %v773
        %v775 = vmax.f32 %v774, 0.0
        %v776 = vmul.f32 %v775, %v775
        %v777 = vmul.f32 %v776, %v688
        %v778 = vmul.f32 %v777, %v768
        %v779 = vadd.f32 %v767, %v778
        %v780 = vrot.slane %v730, 3
        %v781 = vsub.f32 %v730, %v780
        %v782 = vand.u32 2147483647, %v781
        %v783 = vsel %vm734, %v782, 0.0
        %784 = vadd.xlane.f32.xlu0 %v783
        %v785 = vpop.xlane.xlu0 %784
        %v786 = vsub.f32 3.0, %v785
        %v787 = vmax.f32 %v786, 0.0
        %v788 = vmul.f32 %v787, %v787
        %v789 = vmul.f32 %v788, %v688
        %v790 = vmul.f32 %v789, %v780
        %v791 = vadd.f32 %v779, %v790
        %v792 = vrot.slane %v730, 2
        %v793 = vsub.f32 %v730, %v792
        %v794 = vand.u32 2147483647, %v793
        %v795 = vsel %vm734, %v794, 0.0
        %796 = vadd.xlane.f32.xlu0 %v795
        %v797 = vpop.xlane.xlu0 %796
        %v798 = vsub.f32 3.0, %v797
        %v799 = vmax.f32 %v798, 0.0
        %v800 = vmul.f32 %v799, %v799
        %v801 = vmul.f32 %v800, %v688
        %v802 = vmul.f32 %v801, %v792
        %v803 = vadd.f32 %v791, %v802
        %v804 = vrot.slane %v730, 1
        %v805 = vsub.f32 %v730, %v804
        %v806 = vand.u32 2147483647, %v805
        %v807 = vsel %vm734, %v806, 0.0
        %808 = vadd.xlane.f32.xlu0 %v807
        %v809 = vpop.xlane.xlu0 %808
        %v810 = vsub.f32 3.0, %v809
        %v811 = vmax.f32 %v810, 0.0
        %v812 = vmul.f32 %v811, %v811
        %v813 = vmul.f32 %v812, %v688
        %v814 = vmul.f32 %v813, %v804
        %v815 = vadd.f32 %v803, %v814
        %817 = vrot.lane.b32.xlu0 %v815, 124
        %v818 = vpop.permute.xlu0 %817
        %v820 = vsel %vm689, %v818, 0.0
        %821 = vadd.xlane.f32.xlu0 %v820
        %v822 = vpop.xlane.xlu0 %821
        %v823 = vrot.slane %v822, 4
        %v824 = vadd.f32 %v822, %v823
        %v825 = vrot.slane %v824, 2
        %v826 = vadd.f32 %v824, %v825
        %v827 = vrot.slane %v826, 1
        %v828 = vadd.f32 %v826, %v827
        %s829 = vtos %v828
        %v830 = vstv %s829
        %v831 = vsub.f32 %v700, 1.0
        %v832 = vmul.f32 %v700, %v831
        %v833 = vmax.f32 %v832, 1.0
        %vm834 = vcmp.gt.f32.partialorder %v700, 1.5
        %v835 = vrcp.pop %v833
        %v836 = vmul.f32 %v830, %v835
        %v837 = vsel %vm834, %v836, 0.0
        %v838 = vand.u32 2147483647, %v595
        %v839 = vand.u32 2147483647, %v618
        %v840 = vadd.f32 %v838, %v839
        %v841 = vand.u32 2147483647, %v643
        %v842 = vadd.f32 %v840, %v841
        %v843 = vand.u32 2147483647, %v668
        %v844 = vadd.f32 %v842, %v843
        %v845 = vmul.f32 %v844, %v688
        %v846 = vsel %vm689, %v845, 0.0
        %847 = vadd.xlane.f32.xlu0 %v846
        %v848 = vpop.xlane.xlu0 %847
        %v849 = vrot.slane %v848, 4
        %v850 = vadd.f32 %v848, %v849
        %v851 = vrot.slane %v850, 2
        %v852 = vadd.f32 %v850, %v851
        %v853 = vrot.slane %v852, 1
        %v854 = vadd.f32 %v852, %v853
        %s855 = vtos %v854
        %v856 = vstv %s855
        %v857 = vmul.f32 %v856, %v702
        %v858 = vsel %vm714, %v857, 0.0
        %v859 = vmul.f32 %v858, 0.001
        %v860 = vadd.f32 %v716, %v837
        %v861 = vadd.f32 %v860, %v859
        %v862 = vadd.f32 %v861, 0.0
        %v863 = vadd.f32 %v716, 0.0
        %v864 = vadd.f32 %v837, 0.0
        %v865 = vadd.f32 %v859, 0.0
        %v866 = vsel %vm719, %v862, 0.0
        %v867 = vsel %vm722, %v863, 0.0
        %v868 = vadd.f32 %v866, %v867
        %v869 = vsel %vm725, %v864, 0.0
        %v870 = vadd.f32 %v868, %v869
        %v871 = vsel %vm728, %v865, 0.0
        %v872 = vadd.f32 %v870, %v871
        %873 = vst [vmem:[%s259] sm:$0xff] %v872
        %s874 = sand.u32 %s109, 1
        %s875 = scalar_lea.sflag [#allocation4], %s874
        %s876 = sand.u32 %s109, 1
        %s877 = smul.addr %s876, 8
        %s878 = scalar_lea.vmem [#allocation8], %s877
        // Predicated region
        $region45: #{tpu_custom_call.1} parent=31 // pred_check
          %p879 = pneg %p119
        $region46: #{tpu_custom_call.1} parent=31 // pred_check_branch
          %881 = sbr.rel (%p879) target = $region48
        $region47: #{tpu_custom_call.1} parent=31 // pred_region
          %s883 = ssub.s32 128, 128
          %884 = vsyncadd %s875, %s883
          %s885 = smul.addr %s23, 128
          %s886 = scalar_lea.hbm %s3, %s885
          %s888 = sshll.u32 %s878, 4
          %s889 = int_to_ptr.vmem [resolvable:$true] %s888
          %891 = dma.vmem_to_hbm [thread:$0]  %s889, 128, %s886, %s875
        $region48: #{tpu_custom_call.1} parent=31 // pred_fallthru
          _
      $region32: #{tpu_custom_call.1} parent=5 // pred_fallthru
        _
      %p892 = scmp.le.s32.totalorder 2, %s18
      // Predicated region
      $region49: #{tpu_custom_call.1} parent=5 // pred_check
        %p893 = pneg %p892
      $region50: #{tpu_custom_call.1} parent=5 // pred_check_branch
        %895 = sbr.rel (%p893) target = $region52
      $region51: #{tpu_custom_call.1} parent=5 // pred_region
        %s896 = ssub.s32 %s18, 2
        // Predicated region
        $region53: #{tpu_custom_call.1} parent=51 // pred_check
          %p897 = pneg %p125
        $region54: #{tpu_custom_call.1} parent=51 // pred_check_branch
          %899 = sbr.rel (%p897) target = $region56
        $region55: #{tpu_custom_call.1} parent=51 // pred_region
          %s900 = sand.u32 %s110, 1
          %s901 = scalar_lea.sflag [#allocation4], %s900
          %s902 = sand.u32 %s110, 1
          %s903 = smul.addr %s902, 8
          %s904 = scalar_lea.vmem [#allocation8], %s903
          %905 = dma.done %s901, 128
        $region56: #{tpu_custom_call.1} parent=51 // pred_fallthru
          _
      $region52: #{tpu_custom_call.1} parent=5 // pred_fallthru
        _
    $region6: #{tpu_custom_call.1} parent=1 // loop_footer
      %s22 = sadd.s32 1, %s18
    $region7: #{tpu_custom_call.1} parent=1 // loop_footer_branch
      %17 = sbr.rel target = $region3
    $region8: #{tpu_custom_call.1} parent=1 // loop_exit
      _
    %906 = vsyncpa [#allocation3], 1
    %s907 = scalar_lea.sflag [#allocation3], 1
    %908 = vsyncpa %s907, 1
    %909 = vsyncpa [#allocation6], 1
    %s910 = scalar_lea.sflag [#allocation6], 1
    %911 = vsyncpa %s910, 1
    %912 = vsyncpa [#allocation4], 1
    %s913 = scalar_lea.sflag [#allocation4], 1
    %914 = vsyncpa %s913, 1

</llo_original>
